<compile_context>
chip_gen: v7x
topology: tpu7x:2x2x1
jax: 0.10.0
libtpu: 0.0.40
codegen_flags: <defaults>
</compile_context>

<pallas_src>
import functools

import jax
import jax.numpy as jnp
from jax.experimental import pallas as pl
from jax.experimental.pallas import tpu as pltpu


def _round_up(x, m):
    return ((x + m - 1) // m) * m


def _fused_gcn_kernel(a_ref, x_ref, w1t_ref, b1_ref, w2t_ref, b2_ref,
                      o_ref, acc_ref, xw1_ref, z2_ref, *, tile, hpad, cpad):
    p = pl.program_id(0)          # phase: 0 = layer 1, 1 = layer 2
    i = pl.program_id(1)          # row tile of A / output
    k = pl.program_id(2)          # reduction tile over A's columns
    nk = pl.num_programs(2)

    # ---- init accumulator at the start of every (phase, row-tile) pass ----
    @pl.when(k == 0)
    def _():
        acc_ref[...] = jnp.zeros_like(acc_ref)

    # ---------------- phase 0: H = relu(A @ (X @ W1.T) + b1) ----------------
    @pl.when(p == 0)
    def _():
        row = pl.multiple_of(k * tile, tile)

        # Project X once (first row tile only) and cache XW1 = X @ W1.T in
        # VMEM; all later row tiles / k steps reuse it (X never re-streamed).
        @pl.when(i == 0)
        def _():
            xw1 = jnp.dot(x_ref[...], w1t_ref[...],
                          preferred_element_type=jnp.float32)
            xw1_ref[pl.ds(row, tile), :] = xw1.astype(xw1_ref.dtype)

        acc_ref[:, :hpad] += jnp.dot(
            a_ref[...], xw1_ref[pl.ds(row, tile), :],
            preferred_element_type=jnp.float32)

        # Finalize row tile: bias + relu, project to class dim, stash
        # Z2 = H @ W2.T in the resident VMEM cache for phase 1.
        @pl.when(k == nk - 1)
        def _():
            h = jnp.maximum(acc_ref[:, :hpad] + b1_ref[...], 0.0)
            orow = pl.multiple_of(i * tile, tile)
            z2_ref[pl.ds(orow, tile), :] = jnp.dot(
                h.astype(z2_ref.dtype), w2t_ref[...],
                preferred_element_type=jnp.float32).astype(z2_ref.dtype)

    # ---------------- phase 1: out = A @ Z2 + b2 ----------------
    @pl.when(p == 1)
    def _():
        row = pl.multiple_of(k * tile, tile)
        acc_ref[:, :cpad] += jnp.dot(
            a_ref[...], z2_ref[pl.ds(row, tile), :],
            preferred_element_type=jnp.float32)

        @pl.when(k == nk - 1)
        def _():
            # Lane-dense full-block store (cpad is a multiple of 128).
            o_ref[...] = (acc_ref[:, :cpad] + b2_ref[...]).astype(o_ref.dtype)


def simple_gcn_forward(X, A, params, *, tile=256):
    """Fused SimpleGCN forward: relu(A@X@W1.T + b1) -> A@(.)@W2.T + b2."""
    W1, b1, W2, b2 = params
    N, Fin = X.shape
    hidden = W1.shape[0]
    classes = W2.shape[0]

    npad = _round_up(N, tile)
    fpad = _round_up(Fin, 128)
    hpad = _round_up(hidden, 128)
    cpad = _round_up(classes, 128)
    ni = npad // tile
    nk = npad // tile

    # Zero-padded operands.  Everything that feeds the MXU is bf16; biases f32.
    A_p = jnp.zeros((npad, npad), jnp.bfloat16).at[:N, :N].set(
        A.astype(jnp.bfloat16))
    X_p = jnp.zeros((npad, fpad), jnp.bfloat16).at[:N, :Fin].set(
        X.astype(jnp.bfloat16))
    W1t = jnp.zeros((fpad, hpad), jnp.bfloat16).at[:Fin, :hidden].set(
        W1.T.astype(jnp.bfloat16))
    b1p = jnp.zeros((1, hpad), jnp.float32).at[0, :hidden].set(b1)
    W2t = jnp.zeros((hpad, cpad), jnp.bfloat16).at[:hidden, :classes].set(
        W2.T.astype(jnp.bfloat16))
    b2p = jnp.zeros((1, cpad), jnp.float32).at[0, :classes].set(b2)

    flops = (2 * npad * npad * (hpad + cpad)        # the two N^2 matmuls
             + 2 * npad * fpad * hpad               # X @ W1.T (computed once)
             + 2 * npad * hpad * cpad)              # H @ W2.T
    bytes_accessed = (2 * npad * npad * 2           # A streamed in both phases
                      + npad * fpad * 2             # X streamed exactly once
                      + (fpad * hpad + hpad * cpad) * 2
                      + (hpad + cpad) * 4
                      + npad * cpad * 4)            # out

    kernel = functools.partial(_fused_gcn_kernel,
                               tile=tile, hpad=hpad, cpad=cpad)

    def x_index(p, i, k):
        # X is only consumed at (phase 0, row tile 0); pin its block elsewhere
        # so the pipeline never re-fetches X from HBM.
        return (k * (1 - p) * (1 - jnp.minimum(i, 1)), 0)

    out_pad = pl.pallas_call(
        kernel,
        out_shape=jax.ShapeDtypeStruct((npad, cpad), jnp.float32),
        grid=(2, ni, nk),
        in_specs=[
            pl.BlockSpec((tile, tile), lambda p, i, k: (i, k)),          # A
            pl.BlockSpec((tile, fpad), x_index),                         # X
            pl.BlockSpec((fpad, hpad), lambda p, i, k: (0, 0)),          # W1.T
            pl.BlockSpec((1, hpad), lambda p, i, k: (0, 0)),             # b1
            pl.BlockSpec((hpad, cpad), lambda p, i, k: (0, 0)),          # W2.T
            pl.BlockSpec((1, cpad), lambda p, i, k: (0, 0)),             # b2
        ],
        # Output blocks are only touched in phase 1 (index pinned in phase 0,
        # so no garbage write-back and no extra HBM writes).
        out_specs=pl.BlockSpec((tile, cpad), lambda p, i, k: (i * p, 0)),
        scratch_shapes=[
            pltpu.VMEM((tile, max(hpad, cpad)), jnp.float32),   # f32 accumulator
            pltpu.VMEM((npad, hpad), jnp.bfloat16),             # XW1 = X @ W1.T
            pltpu.VMEM((npad, cpad), jnp.bfloat16),             # Z2  = H @ W2.T
        ],
        compiler_params=pltpu.CompilerParams(
            dimension_semantics=("arbitrary", "arbitrary", "arbitrary")),
        cost_estimate=pl.CostEstimate(
            flops=flops, transcendentals=0, bytes_accessed=bytes_accessed),
    )(A_p, X_p, W1t, b1p, W2t, b2p)

    return out_pad[:N, :classes]


def init_params(key, n_features, n_hidden, n_classes):
    # Deterministic synthetic init (nn.Linear-shaped weights: [out, in]).
    k1, k2, k3, k4 = jax.random.split(key, 4)
    W1 = jax.random.normal(k1, (n_hidden, n_features), jnp.float32) * 0.1
    b1 = jax.random.normal(k2, (n_hidden,), jnp.float32) * 0.1
    W2 = jax.random.normal(k3, (n_classes, n_hidden), jnp.float32) * 0.1
    b2 = jax.random.normal(k4, (n_classes,), jnp.float32) * 0.1
    return W1, b1, W2, b2


if __name__ == "__main__":
    key = jax.random.PRNGKey(0)
    n_nodes, n_features, n_hidden, n_classes = 256, 64, 32, 16

    kx, ka, kp = jax.random.split(key, 3)
    X = jax.random.normal(kx, (n_nodes, n_features), jnp.float32)
    # Symmetric row-normalized adjacency (dense), deterministic.
    A_raw = jax.random.uniform(ka, (n_nodes, n_nodes), jnp.float32)
    A = (A_raw + A_raw.T) * 0.5 + jnp.eye(n_nodes, dtype=jnp.float32)
    A = A / jnp.sum(A, axis=1, keepdims=True)

    params = init_params(kp, n_features, n_hidden, n_classes)

    fwd = jax.jit(simple_gcn_forward)
    out = jax.block_until_ready(fwd(X, A, params))
    assert out.shape == (n_nodes, n_classes)

    W1, b1, W2, b2 = params

    # Reference 1: mirrors the kernel's dtype strategy exactly (bf16 streams /
    # weights, f32 accumulation and biases).  Tight tolerance.
    A_bf = A.astype(jnp.bfloat16)
    X_bf = X.astype(jnp.bfloat16)
    W1t_bf = W1.T.astype(jnp.bfloat16)
    W2t_bf = W2.T.astype(jnp.bfloat16)
    xw1 = jnp.dot(X_bf, W1t_bf,
                  preferred_element_type=jnp.float32).astype(jnp.bfloat16)
    H_ref = jnp.maximum(
        jnp.dot(A_bf, xw1, preferred_element_type=jnp.float32) + b1, 0.0)
    Z2_ref = jnp.dot(H_ref.astype(jnp.bfloat16), W2t_bf,
                     preferred_element_type=jnp.float32).astype(jnp.bfloat16)
    out_ref = jnp.dot(A_bf, Z2_ref, preferred_element_type=jnp.float32) + b2
    assert jnp.allclose(out, out_ref, atol=2e-3, rtol=2e-2), (
        float(jnp.max(jnp.abs(out - out_ref))))

    # Reference 2: full-f32 PyTorch-equivalent semantics, loose tolerance
    # (sanity check that the bf16 streaming did not change the math).
    H32 = jnp.maximum(A @ X @ W1.T + b1, 0.0)
    out32 = A @ H32 @ W2.T + b2
    assert jnp.allclose(out, out32, atol=5e-2, rtol=5e-2), (
        float(jnp.max(jnp.abs(out - out32))))

    print("KERNEL_OK")
</pallas_src>

<mosaic_0001>
module attributes {stable_mosaic.version = 11 : i64} {
  func.func @_fused_gcn_kernel(%arg0: i32, %arg1: i32, %arg2: i32, %arg3: memref<256x256xbf16, #tpu.memory_space<vmem>>, %arg4: memref<256x128xbf16, #tpu.memory_space<vmem>>, %arg5: memref<128x128xbf16, #tpu.memory_space<vmem>>, %arg6: memref<1x128xf32, #tpu.memory_space<vmem>>, %arg7: memref<128x128xbf16, #tpu.memory_space<vmem>>, %arg8: memref<1x128xf32, #tpu.memory_space<vmem>>, %arg9: memref<256x128xf32, #tpu.memory_space<vmem>>, %arg10: memref<256x128xf32, #tpu.memory_space<vmem>>, %arg11: memref<256x128xbf16, #tpu.memory_space<vmem>>, %arg12: memref<256x128xbf16, #tpu.memory_space<vmem>>) attributes {dimension_semantics = [#tpu.dimension_semantics<arbitrary>, #tpu.dimension_semantics<arbitrary>, #tpu.dimension_semantics<arbitrary>], iteration_bounds = array<i64: 2, 1, 1>, scalar_prefetch = 0 : i64, scratch_operands = 3 : i64, tpu.core_type = #tpu.core_type<tc>, window_params = [{transform_indices = @transform_0, window_bounds = array<i64: 256, 256>}, {transform_indices = @transform_1, window_bounds = array<i64: 256, 128>}, {pipeline_mode = #tpu.pipeline_mode<synchronous>, transform_indices = @transform_2, window_bounds = array<i64: 128, 128>}, {pipeline_mode = #tpu.pipeline_mode<synchronous>, transform_indices = @transform_3, window_bounds = array<i64: 1, 128>}, {pipeline_mode = #tpu.pipeline_mode<synchronous>, transform_indices = @transform_4, window_bounds = array<i64: 128, 128>}, {pipeline_mode = #tpu.pipeline_mode<synchronous>, transform_indices = @transform_5, window_bounds = array<i64: 1, 128>}, {transform_indices = @transform_6, window_bounds = array<i64: 256, 128>}]} {
    %c0_i32 = arith.constant 0 : i32
    %0 = arith.cmpi eq, %arg2, %c0_i32 : i32
    %1 = arith.extui %0 : i1 to i32
    %c0_i32_0 = arith.constant 0 : i32
    %2 = arith.cmpi ne, %1, %c0_i32_0 : i32
    scf.if %2 {
      %cst = arith.constant 0.000000e+00 : f32
      %9 = vector.broadcast %cst : f32 to vector<256x128xf32>
      %c0 = arith.constant 0 : index
      %c0_4 = arith.constant 0 : index
      %10 = vector.load %arg10[%c0, %c0_4] : memref<256x128xf32, #tpu.memory_space<vmem>>, vector<256x128xf32>
      tpu.vector_store %arg10[%c0, %c0_4], %9 {strides = array<i32>} : memref<256x128xf32, #tpu.memory_space<vmem>>, vector<256x128xf32>,
    } else {
    }
    %c0_i32_1 = arith.constant 0 : i32
    %3 = arith.cmpi eq, %arg0, %c0_i32_1 : i32
    %4 = arith.extui %3 : i1 to i32
    %c0_i32_2 = arith.constant 0 : i32
    %5 = arith.cmpi ne, %4, %c0_i32_2 : i32
    scf.if %5 {
      %c256_i32 = arith.constant 256 : i32
      %9 = arith.muli %arg2, %c256_i32 : i32
      %10 = tpu.assume_multiple %9, 256 : i32
      %c0_i32_4 = arith.constant 0 : i32
      %11 = arith.cmpi eq, %arg1, %c0_i32_4 : i32
      %12 = arith.extui %11 : i1 to i32
      %c0_i32_5 = arith.constant 0 : i32
      %13 = arith.cmpi ne, %12, %c0_i32_5 : i32
      scf.if %13 {
        %c0_14 = arith.constant 0 : index
        %c0_15 = arith.constant 0 : index
        %24 = vector.load %arg4[%c0_14, %c0_15] : memref<256x128xbf16, #tpu.memory_space<vmem>>, vector<256x128xbf16>
        %c0_16 = arith.constant 0 : index
        %c0_17 = arith.constant 0 : index
        %25 = vector.load %arg5[%c0_16, %c0_17] : memref<128x128xbf16, #tpu.memory_space<vmem>>, vector<128x128xbf16>
        %cst_18 = arith.constant dense<0.000000e+00> : vector<256x128xf32>
        %26 = tpu.matmul %24, %25, %cst_18 {dimension_numbers = #tpu.dot_dimension_numbers<[1], [0], [0], [1], [0, 0, 1, 1], [], []>} : vector<256x128xbf16>, vector<128x128xbf16>, vector<256x128xf32> -> vector<256x128xf32>
        %27 = arith.truncf %26 : vector<256x128xf32> to vector<256x128xbf16>
        %28 = arith.index_cast %10 : i32 to index
        %c0_19 = arith.constant 0 : index
        %29 = vector.load %arg11[%28, %c0_19] : memref<256x128xbf16, #tpu.memory_space<vmem>>, vector<256x128xbf16>
        tpu.vector_store %arg11[%28, %c0_19], %27 {strides = array<i32>} : memref<256x128xbf16, #tpu.memory_space<vmem>>, vector<256x128xbf16>,
      } else {
      }
      %c0 = arith.constant 0 : index
      %c0_6 = arith.constant 0 : index
      %14 = vector.load %arg10[%c0, %c0_6] : memref<256x128xf32, #tpu.memory_space<vmem>>, vector<256x128xf32>
      %c0_7 = arith.constant 0 : index
      %c0_8 = arith.constant 0 : index
      %15 = vector.load %arg3[%c0_7, %c0_8] : memref<256x256xbf16, #tpu.memory_space<vmem>>, vector<256x256xbf16>
      %16 = arith.index_cast %10 : i32 to index
      %c0_9 = arith.constant 0 : index
      %17 = vector.load %arg11[%16, %c0_9] : memref<256x128xbf16, #tpu.memory_space<vmem>>, vector<256x128xbf16>
      %cst = arith.constant dense<0.000000e+00> : vector<256x128xf32>
      %18 = tpu.matmul %15, %17, %cst {dimension_numbers = #tpu.dot_dimension_numbers<[1], [0], [0], [1], [0, 0, 1, 1], [], []>} : vector<256x256xbf16>, vector<256x128xbf16>, vector<256x128xf32> -> vector<256x128xf32>
      %19 = arith.addf %14, %18 : vector<256x128xf32>
      %c0_10 = arith.constant 0 : index
      %c0_11 = arith.constant 0 : index
      %20 = vector.load %arg10[%c0_10, %c0_11] : memref<256x128xf32, #tpu.memory_space<vmem>>, vector<256x128xf32>
      tpu.vector_store %arg10[%c0_10, %c0_11], %19 {strides = array<i32>} : memref<256x128xf32, #tpu.memory_space<vmem>>, vector<256x128xf32>,
      %c0_i32_12 = arith.constant 0 : i32
      %21 = arith.cmpi eq, %arg2, %c0_i32_12 : i32
      %22 = arith.extui %21 : i1 to i32
      %c0_i32_13 = arith.constant 0 : i32
      %23 = arith.cmpi ne, %22, %c0_i32_13 : i32
      scf.if %23 {
        %c0_14 = arith.constant 0 : index
        %c0_15 = arith.constant 0 : index
        %24 = vector.load %arg10[%c0_14, %c0_15] : memref<256x128xf32, #tpu.memory_space<vmem>>, vector<256x128xf32>
        %c0_16 = arith.constant 0 : index
        %c0_17 = arith.constant 0 : index
        %25 = vector.load %arg6[%c0_16, %c0_17] : memref<1x128xf32, #tpu.memory_space<vmem>>, vector<1x128xf32>
        %26 = vector.broadcast %25 : vector<1x128xf32> to vector<256x128xf32>
        %27 = arith.addf %24, %26 : vector<256x128xf32>
        %cst_18 = arith.constant 0.000000e+00 : f32
        %28 = vector.broadcast %cst_18 : f32 to vector<256x128xf32>
        %29 = arith.maximumf %27, %28 : vector<256x128xf32>
        %c256_i32_19 = arith.constant 256 : i32
        %30 = arith.muli %arg1, %c256_i32_19 : i32
        %31 = tpu.assume_multiple %30, 256 : i32
        %32 = arith.truncf %29 : vector<256x128xf32> to vector<256x128xbf16>
        %c0_20 = arith.constant 0 : index
        %c0_21 = arith.constant 0 : index
        %33 = vector.load %arg7[%c0_20, %c0_21] : memref<128x128xbf16, #tpu.memory_space<vmem>>, vector<128x128xbf16>
        %cst_22 = arith.constant dense<0.000000e+00> : vector<256x128xf32>
        %34 = tpu.matmul %32, %33, %cst_22 {dimension_numbers = #tpu.dot_dimension_numbers<[1], [0], [0], [1], [0, 0, 1, 1], [], []>} : vector<256x128xbf16>, vector<128x128xbf16>, vector<256x128xf32> -> vector<256x128xf32>
        %35 = arith.truncf %34 : vector<256x128xf32> to vector<256x128xbf16>
        %36 = arith.index_cast %31 : i32 to index
        %c0_23 = arith.constant 0 : index
        %37 = vector.load %arg12[%36, %c0_23] : memref<256x128xbf16, #tpu.memory_space<vmem>>, vector<256x128xbf16>
        tpu.vector_store %arg12[%36, %c0_23], %35 {strides = array<i32>} : memref<256x128xbf16, #tpu.memory_space<vmem>>, vector<256x128xbf16>,
      } else {
      }
    } else {
    }
    %c1_i32 = arith.constant 1 : i32
    %6 = arith.cmpi eq, %arg0, %c1_i32 : i32
    %7 = arith.extui %6 : i1 to i32
    %c0_i32_3 = arith.constant 0 : i32
    %8 = arith.cmpi ne, %7, %c0_i32_3 : i32
    scf.if %8 {
      %c256_i32 = arith.constant 256 : i32
      %9 = arith.muli %arg2, %c256_i32 : i32
      %10 = tpu.assume_multiple %9, 256 : i32
      %c0 = arith.constant 0 : index
      %c0_4 = arith.constant 0 : index
      %11 = vector.load %arg10[%c0, %c0_4] : memref<256x128xf32, #tpu.memory_space<vmem>>, vector<256x128xf32>
      %c0_5 = arith.constant 0 : index
      %c0_6 = arith.constant 0 : index
      %12 = vector.load %arg3[%c0_5, %c0_6] : memref<256x256xbf16, #tpu.memory_space<vmem>>, vector<256x256xbf16>
      %13 = arith.index_cast %10 : i32 to index
      %c0_7 = arith.constant 0 : index
      %14 = vector.load %arg12[%13, %c0_7] : memref<256x128xbf16, #tpu.memory_space<vmem>>, vector<256x128xbf16>
      %cst = arith.constant dense<0.000000e+00> : vector<256x128xf32>
      %15 = tpu.matmul %12, %14, %cst {dimension_numbers = #tpu.dot_dimension_numbers<[1], [0], [0], [1], [0, 0, 1, 1], [], []>} : vector<256x256xbf16>, vector<256x128xbf16>, vector<256x128xf32> -> vector<256x128xf32>
      %16 = arith.addf %11, %15 : vector<256x128xf32>
      %c0_8 = arith.constant 0 : index
      %c0_9 = arith.constant 0 : index
      %17 = vector.load %arg10[%c0_8, %c0_9] : memref<256x128xf32, #tpu.memory_space<vmem>>, vector<256x128xf32>
      tpu.vector_store %arg10[%c0_8, %c0_9], %16 {strides = array<i32>} : memref<256x128xf32, #tpu.memory_space<vmem>>, vector<256x128xf32>,
      %c0_i32_10 = arith.constant 0 : i32
      %18 = arith.cmpi eq, %arg2, %c0_i32_10 : i32
      %19 = arith.extui %18 : i1 to i32
      %c0_i32_11 = arith.constant 0 : i32
      %20 = arith.cmpi ne, %19, %c0_i32_11 : i32
      scf.if %20 {
        %c0_12 = arith.constant 0 : index
        %c0_13 = arith.constant 0 : index
        %21 = vector.load %arg10[%c0_12, %c0_13] : memref<256x128xf32, #tpu.memory_space<vmem>>, vector<256x128xf32>
        %c0_14 = arith.constant 0 : index
        %c0_15 = arith.constant 0 : index
        %22 = vector.load %arg8[%c0_14, %c0_15] : memref<1x128xf32, #tpu.memory_space<vmem>>, vector<1x128xf32>
        %23 = vector.broadcast %22 : vector<1x128xf32> to vector<256x128xf32>
        %24 = arith.addf %21, %23 : vector<256x128xf32>
        %c0_16 = arith.constant 0 : index
        %c0_17 = arith.constant 0 : index
        %25 = vector.load %arg9[%c0_16, %c0_17] : memref<256x128xf32, #tpu.memory_space<vmem>>, vector<256x128xf32>
        tpu.vector_store %arg9[%c0_16, %c0_17], %24 {strides = array<i32>} : memref<256x128xf32, #tpu.memory_space<vmem>>, vector<256x128xf32>,
      } else {
      }
    } else {
    }
    return
  }
  func.func @transform_0(%arg0: i32, %arg1: i32, %arg2: i32) -> (i32, i32) {
    %c0_i32 = arith.constant 0 : i32
    return %arg1, %arg2 : i32, i32
  }
  func.func @transform_1(%arg0: i32, %arg1: i32, %arg2: i32) -> (i32, i32) {
    %c1_i32 = arith.constant 1 : i32
    %0 = arith.subi %c1_i32, %arg0 : i32
    %1 = arith.muli %arg2, %0 : i32
    %c1_i32_0 = arith.constant 1 : i32
    %2 = arith.minsi %arg1, %c1_i32_0 : i32
    %c1_i32_1 = arith.constant 1 : i32
    %3 = arith.subi %c1_i32_1, %2 : i32
    %4 = arith.muli %1, %3 : i32
    %c0_i32 = arith.constant 0 : i32
    %c0_i32_2 = arith.constant 0 : i32
    return %4, %c0_i32 : i32, i32
  }
  func.func @transform_2(%arg0: i32, %arg1: i32, %arg2: i32) -> (i32, i32) {
    %c0_i32 = arith.constant 0 : i32
    %c0_i32_0 = arith.constant 0 : i32
    %c0_i32_1 = arith.constant 0 : i32
    return %c0_i32, %c0_i32_0 : i32, i32
  }
  func.func @transform_3(%arg0: i32, %arg1: i32, %arg2: i32) -> (i32, i32) {
    %c0_i32 = arith.constant 0 : i32
    %c0_i32_0 = arith.constant 0 : i32
    %c0_i32_1 = arith.constant 0 : i32
    return %c0_i32, %c0_i32_0 : i32, i32
  }
  func.func @transform_4(%arg0: i32, %arg1: i32, %arg2: i32) -> (i32, i32) {
    %c0_i32 = arith.constant 0 : i32
    %c0_i32_0 = arith.constant 0 : i32
    %c0_i32_1 = arith.constant 0 : i32
    return %c0_i32, %c0_i32_0 : i32, i32
  }
  func.func @transform_5(%arg0: i32, %arg1: i32, %arg2: i32) -> (i32, i32) {
    %c0_i32 = arith.constant 0 : i32
    %c0_i32_0 = arith.constant 0 : i32
    %c0_i32_1 = arith.constant 0 : i32
    return %c0_i32, %c0_i32_0 : i32, i32
  }
  func.func @transform_6(%arg0: i32, %arg1: i32, %arg2: i32) -> (i32, i32) {
    %0 = arith.muli %arg1, %arg0 : i32
    %c0_i32 = arith.constant 0 : i32
    %c0_i32_0 = arith.constant 0 : i32
    return %0, %c0_i32 : i32, i32
  }
}

</mosaic_0001>

<llo_original>
// kernel: simple_gcn_forward.1
$region0: #{simple_gcn_forward.1}
  #allocation0 [shape = 'u32[]', space=smem, size = 0x4, offset = 0x4, fixed_abs, tag = 'smem constant byte address 0x4 - core index']
  #allocation1 [shape = 'u32[144,128]{1,0:T(1,128)}', space=vmem, size = 0x12000, scoped, tag = 'internal scratch']
  #allocation2 [shape = 'f32[256,128]{1,0:T(8,128)}', space=vmem, size = 0x20000, scoped, tag = 'scratch operand']
  #allocation3 [shape = 'bf16[256,128]{1,0:T(16,128)(2,1)}', space=vmem, size = 0x10000, scoped, tag = 'scratch operand']
  #allocation4 [shape = 'bf16[256,128]{1,0:T(16,128)(2,1)}', space=vmem, size = 0x10000, scoped, tag = 'scratch operand']
  %s0 = inlined_call_operand.vmem [shape: bf16[256,256], index: 0, kind: input, shape index: {}]
  %s1 = inlined_call_operand.vmem [shape: bf16[256,128], index: 1, kind: input, shape index: {}]
  %s2 = inlined_call_operand.vmem [shape: bf16[128,128], index: 2, kind: input, shape index: {}]
  %s3 = inlined_call_operand.vmem [shape: f32[1,128], index: 3, kind: input, shape index: {}]
  %s4 = inlined_call_operand.vmem [shape: bf16[128,128], index: 4, kind: input, shape index: {}]
  %s5 = inlined_call_operand.vmem [shape: f32[1,128], index: 5, kind: input, shape index: {}]
  %s6 = inlined_call_operand.vmem [shape: f32[256,128], index: 6, kind: output, shape index: {}]
  %s7 = sld [smem:[#allocation0]]
  $region81: #{simple_gcn_forward.1} parent=0
    _
  %s9 = ssub.s32 1, %s7
  %s10 = scalar_select 0, %s9, %s7
  loop: start=0, step=1, limit=4
  $region2: #{simple_gcn_forward.1} parent=0 // loop_pre_header
    _
  $region3: #{simple_gcn_forward.1} parent=0 // loop_header
    %s12 = sphi 0, %s16
    %p13 = scmp.ge.s32.totalorder %s12, 4
    %s19 = sphi 0, %s38
    %s20 = sphi 0, %s34
    %s21 = sphi 0, %s30
    %s22 = sphi 0, %s19
    %s23 = sphi 0, %s20
    %s24 = sphi 0, %s21
    %s25 = sphi 0, %s22
    %s26 = sphi 0, %s23
    %s27 = sphi 0, %s24
    %s43 = sphi 0, %s45
    %s46 = sphi 0, %s43
    %s47 = sphi 0, %s46
    %s63 = sphi 0, %s47
    %s81 = sphi 0, %s83
    %s84 = sphi 0, %s81
    %s85 = sphi 0, %s84
    %s101 = sphi 0, %s85
    %s105 = sphi 0, %s105
    %s107 = sphi 0, %s105
    %s108 = sphi 0, %s107
    %s122 = sphi 0, %s108
    %s126 = sphi 0, %s126
    %s128 = sphi 0, %s126
    %s129 = sphi 0, %s128
    %s143 = sphi 0, %s129
    %s147 = sphi 0, %s147
    %s149 = sphi 0, %s147
    %s150 = sphi 0, %s149
    %s164 = sphi 0, %s150
    %s168 = sphi 0, %s168
    %s170 = sphi 0, %s168
    %s171 = sphi 0, %s170
    %s185 = sphi 0, %s171
    %s193 = sphi 0, %s195
    %s196 = sphi 0, %s193
    %s197 = sphi 0, %s196
    %s213 = sphi 0, %s197
  $region4: #{simple_gcn_forward.1} parent=0 // loop_header_branch
    %15 = sbr.rel (%p13) target = $region8
  $region5: #{simple_gcn_forward.1} parent=0 // loop_body
    %s17 = ssub.s32 %s12, 1
    %s18 = ssub.s32 %s12, 2
    %s28 = sadd.s32 1, %s21
    %p29 = scmp.ge.s32.totalorder %s28, 1
    %s30 = scalar_select %p29, 0, %s28
    %s31 = sadd.s32 1, %s20
    %s32 = scalar_select %p29, %s31, %s20
    %p33 = scmp.ge.s32.totalorder %s32, 1
    %s34 = scalar_select %p33, 0, %s32
    %s35 = sadd.s32 1, %s19
    %s36 = scalar_select %p33, %s35, %s19
    %p37 = scmp.ge.s32.totalorder %s36, 2
    %s38 = scalar_select %p37, 0, %s36
    %s39 = ssub.s32 %s20, %s34
    %s40 = ssub.s32 %s21, %s30
    %s41 = sor.u32 %s39, %s40
    %p42 = scmp.eq.s32.totalorder %s41, 0
    %s44 = sadd.s32 %s43, 1
    %s45 = scalar_select %p42, %s43, %s44
    %p48 = pneg %p42
    %p49 = scmp.eq.s32.totalorder %s12, 1
    %p50 = por %p48, %p49
    %p51 = scmp.ne.s32.totalorder %s43, %s46
    %p52 = scmp.eq.s32.totalorder %s12, 0
    %p53 = por %p51, %p52
    %p54 = scmp.ne.s32.totalorder %s43, %s46
    %p55 = scmp.eq.s32.totalorder %s17, 1
    %p56 = por %p54, %p55
    %p57 = scmp.ne.s32.totalorder %s46, %s47
    %p58 = scmp.eq.s32.totalorder %s17, 0
    %p59 = por %p57, %p58
    %p60 = scmp.ne.s32.totalorder %s46, %s47
    %p61 = scmp.eq.s32.totalorder %s18, 1
    %p62 = por %p60, %p61
    %p64 = scmp.ne.s32.totalorder %s47, %s63
    %p65 = scmp.eq.s32.totalorder %s18, 0
    %p66 = por %p64, %p65
    %s67 = ssub.s32 1, %s19
    %s68 = smul.u32 %s21, %s67
    %p69 = scmp.lt.s32.totalorder %s20, 1
    %s70 = scalar_select %p69, %s20, 1
    %s71 = ssub.s32 1, %s70
    %s72 = smul.u32 %s68, %s71
    %s73 = ssub.s32 1, %s38
    %s74 = smul.u32 %s30, %s73
    %p75 = scmp.lt.s32.totalorder %s34, 1
    %s76 = scalar_select %p75, %s34, 1
    %s77 = ssub.s32 1, %s76
    %s78 = smul.u32 %s74, %s77
    %s79 = ssub.s32 %s72, %s78
    %p80 = scmp.eq.s32.totalorder %s79, 0
    %s82 = sadd.s32 %s81, 1
    %s83 = scalar_select %p80, %s81, %s82
    %p86 = pneg %p80
    %p87 = scmp.eq.s32.totalorder %s12, 1
    %p88 = por %p86, %p87
    %p89 = scmp.ne.s32.totalorder %s81, %s84
    %p90 = scmp.eq.s32.totalorder %s12, 0
    %p91 = por %p89, %p90
    %p92 = scmp.ne.s32.totalorder %s81, %s84
    %p93 = scmp.eq.s32.totalorder %s17, 1
    %p94 = por %p92, %p93
    %p95 = scmp.ne.s32.totalorder %s84, %s85
    %p96 = scmp.eq.s32.totalorder %s17, 0
    %p97 = por %p95, %p96
    %p98 = scmp.ne.s32.totalorder %s84, %s85
    %p99 = scmp.eq.s32.totalorder %s18, 1
    %p100 = por %p98, %p99
    %p102 = scmp.ne.s32.totalorder %s85, %s101
    %p103 = scmp.eq.s32.totalorder %s18, 0
    %p104 = por %p102, %p103
    %s106 = sadd.s32 %s105, 1
    %p109 = scmp.eq.s32.totalorder %s12, 1
    %p110 = scmp.ne.s32.totalorder %s105, %s107
    %p111 = scmp.eq.s32.totalorder %s12, 0
    %p112 = por %p110, %p111
    %p113 = scmp.ne.s32.totalorder %s105, %s107
    %p114 = scmp.eq.s32.totalorder %s17, 1
    %p115 = por %p113, %p114
    %p116 = scmp.ne.s32.totalorder %s107, %s108
    %p117 = scmp.eq.s32.totalorder %s17, 0
    %p118 = por %p116, %p117
    %p119 = scmp.ne.s32.totalorder %s107, %s108
    %p120 = scmp.eq.s32.totalorder %s18, 1
    %p121 = por %p119, %p120
    %p123 = scmp.ne.s32.totalorder %s108, %s122
    %p124 = scmp.eq.s32.totalorder %s18, 0
    %p125 = por %p123, %p124
    %s127 = sadd.s32 %s126, 1
    %p130 = scmp.eq.s32.totalorder %s12, 1
    %p131 = scmp.ne.s32.totalorder %s126, %s128
    %p132 = scmp.eq.s32.totalorder %s12, 0
    %p133 = por %p131, %p132
    %p134 = scmp.ne.s32.totalorder %s126, %s128
    %p135 = scmp.eq.s32.totalorder %s17, 1
    %p136 = por %p134, %p135
    %p137 = scmp.ne.s32.totalorder %s128, %s129
    %p138 = scmp.eq.s32.totalorder %s17, 0
    %p139 = por %p137, %p138
    %p140 = scmp.ne.s32.totalorder %s128, %s129
    %p141 = scmp.eq.s32.totalorder %s18, 1
    %p142 = por %p140, %p141
    %p144 = scmp.ne.s32.totalorder %s129, %s143
    %p145 = scmp.eq.s32.totalorder %s18, 0
    %p146 = por %p144, %p145
    %s148 = sadd.s32 %s147, 1
    %p151 = scmp.eq.s32.totalorder %s12, 1
    %p152 = scmp.ne.s32.totalorder %s147, %s149
    %p153 = scmp.eq.s32.totalorder %s12, 0
    %p154 = por %p152, %p153
    %p155 = scmp.ne.s32.totalorder %s147, %s149
    %p156 = scmp.eq.s32.totalorder %s17, 1
    %p157 = por %p155, %p156
    %p158 = scmp.ne.s32.totalorder %s149, %s150
    %p159 = scmp.eq.s32.totalorder %s17, 0
    %p160 = por %p158, %p159
    %p161 = scmp.ne.s32.totalorder %s149, %s150
    %p162 = scmp.eq.s32.totalorder %s18, 1
    %p163 = por %p161, %p162
    %p165 = scmp.ne.s32.totalorder %s150, %s164
    %p166 = scmp.eq.s32.totalorder %s18, 0
    %p167 = por %p165, %p166
    %s169 = sadd.s32 %s168, 1
    %p172 = scmp.eq.s32.totalorder %s12, 1
    %p173 = scmp.ne.s32.totalorder %s168, %s170
    %p174 = scmp.eq.s32.totalorder %s12, 0
    %p175 = por %p173, %p174
    %p176 = scmp.ne.s32.totalorder %s168, %s170
    %p177 = scmp.eq.s32.totalorder %s17, 1
    %p178 = por %p176, %p177
    %p179 = scmp.ne.s32.totalorder %s170, %s171
    %p180 = scmp.eq.s32.totalorder %s17, 0
    %p181 = por %p179, %p180
    %p182 = scmp.ne.s32.totalorder %s170, %s171
    %p183 = scmp.eq.s32.totalorder %s18, 1
    %p184 = por %p182, %p183
    %p186 = scmp.ne.s32.totalorder %s171, %s185
    %p187 = scmp.eq.s32.totalorder %s18, 0
    %p188 = por %p186, %p187
    %s189 = smul.u32 %s20, %s19
    %s190 = smul.u32 %s34, %s38
    %s191 = ssub.s32 %s189, %s190
    %p192 = scmp.eq.s32.totalorder %s191, 0
    %s194 = sadd.s32 %s193, 1
    %s195 = scalar_select %p192, %s193, %s194
    %p198 = pneg %p192
    %p199 = scmp.eq.s32.totalorder %s12, 1
    %p200 = por %p198, %p199
    %p201 = scmp.ne.s32.totalorder %s193, %s196
    %p202 = scmp.eq.s32.totalorder %s12, 0
    %p203 = por %p201, %p202
    %p204 = scmp.ne.s32.totalorder %s193, %s196
    %p205 = scmp.eq.s32.totalorder %s17, 1
    %p206 = por %p204, %p205
    %p207 = scmp.ne.s32.totalorder %s196, %s197
    %p208 = scmp.eq.s32.totalorder %s17, 0
    %p209 = por %p207, %p208
    %p210 = scmp.ne.s32.totalorder %s196, %s197
    %p211 = scmp.eq.s32.totalorder %s18, 1
    %p212 = por %p210, %p211
    %p214 = scmp.ne.s32.totalorder %s197, %s213
    %p215 = scmp.eq.s32.totalorder %s18, 0
    %p216 = por %p214, %p215
    %p217 = scmp.le.s32.totalorder 1, %s12
    %p218 = scmp.lt.s32.totalorder %s12, 3
    %p219 = pnand %p217, %p218
    %p220 = pneg %p219
    // Predicated region
    $region9: #{simple_gcn_forward.1} parent=5 // pred_check
      _
    $region10: #{simple_gcn_forward.1} parent=5 // pred_check_branch
      %222 = sbr.rel (%p219) target = $region12
    $region11: #{simple_gcn_forward.1} parent=5 // pred_region
      %s223 = ssub.s32 %s12, 1
      // Predicated region
      $region13: #{simple_gcn_forward.1} parent=11 // pred_check
        %p224 = pneg %p59
      $region14: #{simple_gcn_forward.1} parent=11 // pred_check_branch
        %226 = sbr.rel (%p224) target = $region16
      $region15: #{simple_gcn_forward.1} parent=11 // pred_region
        %s227 = smul.u32 32, %s23
        %s228 = smul.u32 2, %s24
        %p229 = scmp.lt.s32.totalorder %s227, 31
        %s230 = scalar_select %p229, %s227, 31
        %p231 = scmp.lt.s32.totalorder %s228, 1
        %s232 = scalar_select %p231, %s228, 1
        %s233 = smul.addr %s230, 2
        %s234 = sadd.s32 %s232, %s233
        %s235 = smul.addr %s234, 4
        %s236 = scalar_lea.vmem %s0, %s235
        %s237 = smul.u32 32, %s23
        %s238 = smul.u32 2, %s24
      $region16: #{simple_gcn_forward.1} parent=11 // pred_fallthru
        _
      // Predicated region
      $region17: #{simple_gcn_forward.1} parent=11 // pred_check
        %p239 = pneg %p118
      $region18: #{simple_gcn_forward.1} parent=11 // pred_check_branch
        %241 = sbr.rel (%p239) target = $region20
      $region19: #{simple_gcn_forward.1} parent=11 // pred_region
        _
      $region20: #{simple_gcn_forward.1} parent=11 // pred_fallthru
        _
      // Predicated region
      $region21: #{simple_gcn_forward.1} parent=11 // pred_check
        %p242 = pneg %p139
      $region22: #{simple_gcn_forward.1} parent=11 // pred_check_branch
        %244 = sbr.rel (%p242) target = $region24
      $region23: #{simple_gcn_forward.1} parent=11 // pred_region
        _
      $region24: #{simple_gcn_forward.1} parent=11 // pred_fallthru
        _
      // Predicated region
      $region25: #{simple_gcn_forward.1} parent=11 // pred_check
        %p245 = pneg %p160
      $region26: #{simple_gcn_forward.1} parent=11 // pred_check_branch
        %247 = sbr.rel (%p245) target = $region28
      $region27: #{simple_gcn_forward.1} parent=11 // pred_region
        _
      $region28: #{simple_gcn_forward.1} parent=11 // pred_fallthru
        _
      // Predicated region
      $region29: #{simple_gcn_forward.1} parent=11 // pred_check
        %p248 = pneg %p181
      $region30: #{simple_gcn_forward.1} parent=11 // pred_check_branch
        %250 = sbr.rel (%p248) target = $region32
      $region31: #{simple_gcn_forward.1} parent=11 // pred_region
        _
      $region32: #{simple_gcn_forward.1} parent=11 // pred_fallthru
        _
    $region12: #{simple_gcn_forward.1} parent=5 // pred_fallthru
      _
    %p251 = scmp.lt.s32.totalorder %s12, 2
    // Predicated region
    $region33: #{simple_gcn_forward.1} parent=5 // pred_check
      %p252 = pneg %p251
    $region34: #{simple_gcn_forward.1} parent=5 // pred_check_branch
      %254 = sbr.rel (%p252) target = $region36
    $region35: #{simple_gcn_forward.1} parent=5 // pred_region
      // Predicated region
      $region37: #{simple_gcn_forward.1} parent=35 // pred_check
        %p255 = pneg %p91
      $region38: #{simple_gcn_forward.1} parent=35 // pred_check_branch
        %257 = sbr.rel (%p255) target = $region40
      $region39: #{simple_gcn_forward.1} parent=35 // pred_region
        %s258 = ssub.s32 1, %s19
        %s259 = smul.u32 %s21, %s258
        %p260 = scmp.lt.s32.totalorder %s20, 1
        %s261 = scalar_select %p260, %s20, 1
        %s262 = ssub.s32 1, %s261
        %s263 = smul.u32 %s259, %s262
        %s264 = smul.u32 32, %s263
        %p265 = scmp.lt.s32.totalorder %s264, 31
        %s266 = scalar_select %p265, %s264, 31
        %s267 = smul.addr %s266, 4
        %s268 = scalar_lea.vmem %s1, %s267
        %s269 = ssub.s32 1, %s19
        %s270 = smul.u32 %s21, %s269
        %p271 = scmp.lt.s32.totalorder %s20, 1
        %s272 = scalar_select %p271, %s20, 1
        %s273 = ssub.s32 1, %s272
        %s274 = smul.u32 %s270, %s273
        %s275 = smul.u32 32, %s274
      $region40: #{simple_gcn_forward.1} parent=35 // pred_fallthru
        _
    $region36: #{simple_gcn_forward.1} parent=5 // pred_fallthru
      _
    %p276 = scmp.le.s32.totalorder 1, %s12
    %p277 = scmp.lt.s32.totalorder %s12, 3
    %p278 = pnand %p276, %p277
    %p279 = pneg %p278
    // Predicated region
    $region41: #{simple_gcn_forward.1} parent=5 // pred_check
      _
    $region42: #{simple_gcn_forward.1} parent=5 // pred_check_branch
      %281 = sbr.rel (%p278) target = $region44
    $region43: #{simple_gcn_forward.1} parent=5 // pred_region
      %s282 = ssub.s32 %s12, 1
      %s283 = smul.u32 32, %s23
      %s284 = smul.u32 2, %s24
      %p285 = scmp.lt.s32.totalorder %s283, 31
      %s286 = scalar_select %p285, %s283, 31
      %p287 = scmp.lt.s32.totalorder %s284, 1
      %s288 = scalar_select %p287, %s284, 1
      %s289 = smul.addr %s286, 2
      %s290 = sadd.s32 %s288, %s289
      %s291 = smul.addr %s290, 4
      %s292 = scalar_lea.vmem %s0, %s291
      %p293 = pneg %p59
      %p294 = pneg %p56
      %s295 = ssub.s32 1, %s22
      %s296 = smul.u32 %s24, %s295
      %p297 = scmp.lt.s32.totalorder %s23, 1
      %s298 = scalar_select %p297, %s23, 1
      %s299 = ssub.s32 1, %s298
      %s300 = smul.u32 %s296, %s299
      %s301 = smul.u32 32, %s300
      %p302 = scmp.lt.s32.totalorder %s301, 31
      %s303 = scalar_select %p302, %s301, 31
      %s304 = smul.addr %s303, 4
      %s305 = scalar_lea.vmem %s1, %s304
      %p306 = pneg %p97
      %p307 = pneg %p94
      %p308 = pneg %p118
      %p309 = pneg %p115
      %p310 = pneg %p139
      %p311 = pneg %p136
      %p312 = pneg %p160
      %p313 = pneg %p157
      %p314 = pneg %p181
      %p315 = pneg %p178
      %p316 = pneg %p209
      %p317 = pneg %p206
      %s318 = smul.u32 %s23, %s22
      %s319 = smul.u32 32, %s318
      %p320 = scmp.lt.s32.totalorder %s319, 31
      %s321 = scalar_select %p320, %s319, 31
      %s322 = smul.addr %s321, 8
      %s323 = scalar_lea.vmem %s6, %s322
      %s324 = smul.u32 32, %s23
      %s325 = smul.u32 2, %s24
      %p326 = scmp.lt.s32.totalorder %s324, 31
      %s327 = scalar_select %p326, %s324, 31
      %p328 = scmp.lt.s32.totalorder %s325, 1
      %s329 = scalar_select %p328, %s325, 1
      %s330 = smul.addr %s327, 2
      %s331 = sadd.s32 %s329, %s330
      %s332 = smul.addr %s331, 4
      %s333 = scalar_lea.vmem %s0, %s332
      %s334 = smul.u32 32, %s23
      %s335 = smul.u32 2, %s24
      %s336 = ssub.s32 1, %s22
      %s337 = smul.u32 %s24, %s336
      %p338 = scmp.lt.s32.totalorder %s23, 1
      %s339 = scalar_select %p338, %s23, 1
      %s340 = ssub.s32 1, %s339
      %s341 = smul.u32 %s337, %s340
      %s342 = smul.u32 32, %s341
      %p343 = scmp.lt.s32.totalorder %s342, 31
      %s344 = scalar_select %p343, %s342, 31
      %s345 = smul.addr %s344, 4
      %s346 = scalar_lea.vmem %s1, %s345
      %s347 = ssub.s32 1, %s22
      %s348 = smul.u32 %s24, %s347
      %p349 = scmp.lt.s32.totalorder %s23, 1
      %s350 = scalar_select %p349, %s23, 1
      %s351 = ssub.s32 1, %s350
      %s352 = smul.u32 %s348, %s351
      %s353 = smul.u32 32, %s352
      %s354 = smul.u32 %s23, %s22
      %s355 = smul.u32 32, %s354
      %p356 = scmp.lt.s32.totalorder %s355, 31
      %s357 = scalar_select %p356, %s355, 31
      %s358 = smul.addr %s357, 8
      %s359 = scalar_lea.vmem %s6, %s358
      %s360 = smul.u32 %s23, %s22
      %s361 = smul.u32 32, %s360
      %p363 = scmp.eq.s32.totalorder %s24, 0
      // Predicated region
      $region45: #{simple_gcn_forward.1} parent=43 // pred_check
        %p364 = pneg %p363
      $region46: #{simple_gcn_forward.1} parent=43 // pred_check_branch
        %366 = sbr.rel (%p364) target = $region48
      $region47: #{simple_gcn_forward.1} parent=43 // pred_region
        %367 = vst [vmem:[#allocation2] sm:$0xff] 0.0
        %368 = vst [vmem:[#allocation2 + $0x8] sm:$0xff] 0.0
        %369 = vst [vmem:[#allocation2 + $0x10] sm:$0xff] 0.0
        %370 = vst [vmem:[#allocation2 + $0x18] sm:$0xff] 0.0
        %371 = vst [vmem:[#allocation2 + $0x20] sm:$0xff] 0.0
        %372 = vst [vmem:[#allocation2 + $0x28] sm:$0xff] 0.0
        %373 = vst [vmem:[#allocation2 + $0x30] sm:$0xff] 0.0
        %374 = vst [vmem:[#allocation2 + $0x38] sm:$0xff] 0.0
        %375 = vst [vmem:[#allocation2 + $0x40] sm:$0xff] 0.0
        %376 = vst [vmem:[#allocation2 + $0x48] sm:$0xff] 0.0
        %377 = vst [vmem:[#allocation2 + $0x50] sm:$0xff] 0.0
        %378 = vst [vmem:[#allocation2 + $0x58] sm:$0xff] 0.0
        %379 = vst [vmem:[#allocation2 + $0x60] sm:$0xff] 0.0
        %380 = vst [vmem:[#allocation2 + $0x68] sm:$0xff] 0.0
        %381 = vst [vmem:[#allocation2 + $0x70] sm:$0xff] 0.0
        %382 = vst [vmem:[#allocation2 + $0x78] sm:$0xff] 0.0
        %383 = vst [vmem:[#allocation2 + $0x80] sm:$0xff] 0.0
        %384 = vst [vmem:[#allocation2 + $0x88] sm:$0xff] 0.0
        %385 = vst [vmem:[#allocation2 + $0x90] sm:$0xff] 0.0
        %386 = vst [vmem:[#allocation2 + $0x98] sm:$0xff] 0.0
        %387 = vst [vmem:[#allocation2 + $0xa0] sm:$0xff] 0.0
        %388 = vst [vmem:[#allocation2 + $0xa8] sm:$0xff] 0.0
        %389 = vst [vmem:[#allocation2 + $0xb0] sm:$0xff] 0.0
        %390 = vst [vmem:[#allocation2 + $0xb8] sm:$0xff] 0.0
        %391 = vst [vmem:[#allocation2 + $0xc0] sm:$0xff] 0.0
        %392 = vst [vmem:[#allocation2 + $0xc8] sm:$0xff] 0.0
        %393 = vst [vmem:[#allocation2 + $0xd0] sm:$0xff] 0.0
        %394 = vst [vmem:[#allocation2 + $0xd8] sm:$0xff] 0.0
        %395 = vst [vmem:[#allocation2 + $0xe0] sm:$0xff] 0.0
        %396 = vst [vmem:[#allocation2 + $0xe8] sm:$0xff] 0.0
        %397 = vst [vmem:[#allocation2 + $0xf0] sm:$0xff] 0.0
        %398 = vst [vmem:[#allocation2 + $0xf8] sm:$0xff] 0.0
      $region48: #{simple_gcn_forward.1} parent=43 // pred_fallthru
        _
      %p399 = scmp.eq.s32.totalorder %s22, 0
      // Predicated region
      $region49: #{simple_gcn_forward.1} parent=43 // pred_check
        %p400 = pneg %p399
      $region50: #{simple_gcn_forward.1} parent=43 // pred_check_branch
        %402 = sbr.rel (%p400) target = $region52
      $region51: #{simple_gcn_forward.1} parent=43 // pred_region
        %s403 = smul.u32 %s24, 256
        %p404 = scmp.eq.s32.totalorder %s23, 0
        // Predicated region
        $region53: #{simple_gcn_forward.1} parent=51 // pred_check
          %p405 = pneg %p404
        $region54: #{simple_gcn_forward.1} parent=51 // pred_check_branch
          %407 = sbr.rel (%p405) target = $region56
        $region55: #{simple_gcn_forward.1} parent=51 // pred_region
          %v408 = vld [vmem:[%s346] sm:$0xf]
          %v409 = vld [vmem:[%s346 + $0x4] sm:$0xf]
          %v410 = vld [vmem:[%s346 + $0x8] sm:$0xf]
          %v411 = vld [vmem:[%s346 + $0xc] sm:$0xf]
          %v412 = vld [vmem:[%s346 + $0x10] sm:$0xf]
          %v413 = vld [vmem:[%s346 + $0x14] sm:$0xf]
          %v414 = vld [vmem:[%s346 + $0x18] sm:$0xf]
          %v415 = vld [vmem:[%s346 + $0x1c] sm:$0xf]
          %v416 = vld [vmem:[%s346 + $0x20] sm:$0xf]
          %v417 = vld [vmem:[%s346 + $0x24] sm:$0xf]
          %v418 = vld [vmem:[%s346 + $0x28] sm:$0xf]
          %v419 = vld [vmem:[%s346 + $0x2c] sm:$0xf]
          %v420 = vld [vmem:[%s346 + $0x30] sm:$0xf]
          %v421 = vld [vmem:[%s346 + $0x34] sm:$0xf]
          %v422 = vld [vmem:[%s346 + $0x38] sm:$0xf]
          %v423 = vld [vmem:[%s346 + $0x3c] sm:$0xf]
          %v424 = vld [vmem:[%s346 + $0x40] sm:$0xf]
          %v425 = vld [vmem:[%s346 + $0x44] sm:$0xf]
          %v426 = vld [vmem:[%s346 + $0x48] sm:$0xf]
          %v427 = vld [vmem:[%s346 + $0x4c] sm:$0xf]
          %v428 = vld [vmem:[%s346 + $0x50] sm:$0xf]
          %v429 = vld [vmem:[%s346 + $0x54] sm:$0xf]
          %v430 = vld [vmem:[%s346 + $0x58] sm:$0xf]
          %v431 = vld [vmem:[%s346 + $0x5c] sm:$0xf]
          %v432 = vld [vmem:[%s346 + $0x60] sm:$0xf]
          %v433 = vld [vmem:[%s346 + $0x64] sm:$0xf]
          %v434 = vld [vmem:[%s346 + $0x68] sm:$0xf]
          %v435 = vld [vmem:[%s346 + $0x6c] sm:$0xf]
          %v436 = vld [vmem:[%s346 + $0x70] sm:$0xf]
          %v437 = vld [vmem:[%s346 + $0x74] sm:$0xf]
          %v438 = vld [vmem:[%s346 + $0x78] sm:$0xf]
          %v439 = vld [vmem:[%s346 + $0x7c] sm:$0xf]
          %v440 = vld [vmem:[%s2] sm:$0xf]
          %v441 = vld [vmem:[%s2 + $0x4] sm:$0xf]
          %v442 = vld [vmem:[%s2 + $0x8] sm:$0xf]
          %v443 = vld [vmem:[%s2 + $0xc] sm:$0xf]
          %v444 = vld [vmem:[%s2 + $0x10] sm:$0xf]
          %v445 = vld [vmem:[%s2 + $0x14] sm:$0xf]
          %v446 = vld [vmem:[%s2 + $0x18] sm:$0xf]
          %v447 = vld [vmem:[%s2 + $0x1c] sm:$0xf]
          %v448 = vld [vmem:[%s2 + $0x20] sm:$0xf]
          %v449 = vld [vmem:[%s2 + $0x24] sm:$0xf]
          %v450 = vld [vmem:[%s2 + $0x28] sm:$0xf]
          %v451 = vld [vmem:[%s2 + $0x2c] sm:$0xf]
          %v452 = vld [vmem:[%s2 + $0x30] sm:$0xf]
          %v453 = vld [vmem:[%s2 + $0x34] sm:$0xf]
          %v454 = vld [vmem:[%s2 + $0x38] sm:$0xf]
          %v455 = vld [vmem:[%s2 + $0x3c] sm:$0xf]
          %v488 = vunpack.c.l.b16 %v408
          %v489 = vunpack.c.l.b16 %v409
          %v490 = vunpack.c.l.b16 %v410
          %v491 = vunpack.c.l.b16 %v411
          %v492 = vunpack.c.l.b16 %v412
          %v493 = vunpack.c.l.b16 %v413
          %v494 = vunpack.c.l.b16 %v414
          %v495 = vunpack.c.l.b16 %v415
          %v496 = vunpack.c.l.b16 %v416
          %v497 = vunpack.c.l.b16 %v417
          %v498 = vunpack.c.l.b16 %v418
          %v499 = vunpack.c.l.b16 %v419
          %v500 = vunpack.c.l.b16 %v420
          %v501 = vunpack.c.l.b16 %v421
          %v502 = vunpack.c.l.b16 %v422
          %v503 = vunpack.c.l.b16 %v423
          %v504 = vunpack.c.l.b16 %v424
          %v505 = vunpack.c.l.b16 %v425
          %v506 = vunpack.c.l.b16 %v426
          %v507 = vunpack.c.l.b16 %v427
          %v508 = vunpack.c.l.b16 %v428
          %v509 = vunpack.c.l.b16 %v429
          %v510 = vunpack.c.l.b16 %v430
          %v511 = vunpack.c.l.b16 %v431
          %v512 = vunpack.c.l.b16 %v432
          %v513 = vunpack.c.l.b16 %v433
          %v514 = vunpack.c.l.b16 %v434
          %v515 = vunpack.c.l.b16 %v435
          %v516 = vunpack.c.l.b16 %v436
          %v517 = vunpack.c.l.b16 %v437
          %v518 = vunpack.c.l.b16 %v438
          %v519 = vunpack.c.l.b16 %v439
          %v520 = vpack.c.b16 %v489, %v488
          %v521 = vpack.c.b16 %v491, %v490
          %v522 = vpack.c.b16 %v493, %v492
          %v523 = vpack.c.b16 %v495, %v494
          %v524 = vpack.c.b16 %v497, %v496
          %v525 = vpack.c.b16 %v499, %v498
          %v526 = vpack.c.b16 %v501, %v500
          %v527 = vpack.c.b16 %v503, %v502
          %v528 = vpack.c.b16 %v505, %v504
          %v529 = vpack.c.b16 %v507, %v506
          %v530 = vpack.c.b16 %v509, %v508
          %v531 = vpack.c.b16 %v511, %v510
          %v532 = vpack.c.b16 %v513, %v512
          %v533 = vpack.c.b16 %v515, %v514
          %v534 = vpack.c.b16 %v517, %v516
          %v535 = vpack.c.b16 %v519, %v518
          %v568 = vunpack.c.l.b16 %v440
          %v569 = vunpack.c.l.b16 %v441
          %v570 = vunpack.c.l.b16 %v442
          %v571 = vunpack.c.l.b16 %v443
          %v572 = vunpack.c.l.b16 %v444
          %v573 = vunpack.c.l.b16 %v445
          %v574 = vunpack.c.l.b16 %v446
          %v575 = vunpack.c.l.b16 %v447
          %v576 = vunpack.c.l.b16 %v448
          %v577 = vunpack.c.l.b16 %v449
          %v578 = vunpack.c.l.b16 %v450
          %v579 = vunpack.c.l.b16 %v451
          %v580 = vunpack.c.l.b16 %v452
          %v581 = vunpack.c.l.b16 %v453
          %v582 = vunpack.c.l.b16 %v454
          %v583 = vunpack.c.l.b16 %v455
          %v584 = vpack.c.b16 %v569, %v568
          %v585 = vpack.c.b16 %v571, %v570
          %v586 = vpack.c.b16 %v573, %v572
          %v587 = vpack.c.b16 %v575, %v574
          %v588 = vpack.c.b16 %v577, %v576
          %v589 = vpack.c.b16 %v579, %v578
          %v590 = vpack.c.b16 %v581, %v580
          %v591 = vpack.c.b16 %v583, %v582
          %600 = vmatprep.subr.bf16.mxu0 0
          %601 = vmatpush1.bf16.msra.mxu0 %v584
          %602 = vmatprep.subr.bf16.mxu0 0
          %603 = vmatpush1.bf16.msra.mxu0 %v585
          %604 = vmatprep.subr.bf16.mxu0 0
          %605 = vmatpush1.bf16.msra.mxu0 %v586
          %606 = vmatprep.subr.bf16.mxu0 0
          %607 = vmatpush1.bf16.msra.mxu0 %v587
          %608 = vmatprep.subr.bf16.mxu0 0
          %609 = vmatpush1.bf16.msra.mxu0 %v588
          %610 = vmatprep.subr.bf16.mxu0 0
          %611 = vmatpush1.bf16.msra.mxu0 %v589
          %612 = vmatprep.subr.bf16.mxu0 0
          %613 = vmatpush1.bf16.msra.mxu0 %v590
          %614 = vmatprep.subr.bf16.mxu0 0
          %615 = vmatpush1.bf16.msra.mxu0 %v591
          %616 = vmatprep.subr.bf16.mxu0 0
          %617 = vmatpush1.bf16.msra.mxu0 0
          %618 = vmatprep.subr.bf16.mxu0 0
          %619 = vmatpush1.bf16.msra.mxu0 0
          %620 = vmatprep.subr.bf16.mxu0 0
          %621 = vmatpush1.bf16.msra.mxu0 0
          %622 = vmatprep.subr.bf16.mxu0 0
          %623 = vmatpush1.bf16.msra.mxu0 0
          %624 = vmatprep.subr.bf16.mxu0 0
          %625 = vmatpush1.bf16.msra.mxu0 0
          %626 = vmatprep.subr.bf16.mxu0 0
          %627 = vmatpush1.bf16.msra.mxu0 0
          %628 = vmatprep.subr.bf16.mxu0 0
          %629 = vmatpush1.bf16.msra.mxu0 0
          %630 = vmatprep.subr.bf16.mxu0 0
          %631 = vmatpush1.bf16.msra.mxu0 0
          %632 = vmatprep.mubr.bf16.mxu0 0
          %633 = vmatmul.mubr.bf16.gmra.mrb[0].mxu0 %v520
          %v634 = vpop.f32.mrb[0].mxu0
          %v635 = vadd.f32 0.0, %v634
          %v636 = vpop.f32.mrb[0].mxu0
          %v637 = vpop.f32.mrb[0].mxu0
          %v638 = vadd.f32 0.0, %v637
          %v639 = vpop.f32.mrb[0].mxu0
          %640 = vmatprep.mubr.bf16.mxu0 0
          %641 = vmatmul.mubr.bf16.gmra.mrb[0].mxu0 %v521
          %v642 = vpop.f32.mrb[0].mxu0
          %v643 = vadd.f32 0.0, %v642
          %v644 = vpop.f32.mrb[0].mxu0
          %v645 = vpop.f32.mrb[0].mxu0
          %v646 = vadd.f32 0.0, %v645
          %v647 = vpop.f32.mrb[0].mxu0
          %648 = vmatprep.mubr.bf16.mxu0 0
          %649 = vmatmul.mubr.bf16.gmra.mrb[0].mxu0 %v522
          %v650 = vpop.f32.mrb[0].mxu0
          %v651 = vadd.f32 0.0, %v650
          %v652 = vpop.f32.mrb[0].mxu0
          %v653 = vpop.f32.mrb[0].mxu0
          %v654 = vadd.f32 0.0, %v653
          %v655 = vpop.f32.mrb[0].mxu0
          %656 = vmatprep.mubr.bf16.mxu0 0
          %657 = vmatmul.mubr.bf16.gmra.mrb[0].mxu0 %v523
          %v658 = vpop.f32.mrb[0].mxu0
          %v659 = vadd.f32 0.0, %v658
          %v660 = vpop.f32.mrb[0].mxu0
          %v661 = vpop.f32.mrb[0].mxu0
          %v662 = vadd.f32 0.0, %v661
          %v663 = vpop.f32.mrb[0].mxu0
          %664 = vmatprep.mubr.bf16.mxu0 0
          %665 = vmatmul.mubr.bf16.gmra.mrb[0].mxu0 %v524
          %v666 = vpop.f32.mrb[0].mxu0
          %v667 = vadd.f32 0.0, %v666
          %v668 = vpop.f32.mrb[0].mxu0
          %v669 = vpop.f32.mrb[0].mxu0
          %v670 = vadd.f32 0.0, %v669
          %v671 = vpop.f32.mrb[0].mxu0
          %672 = vmatprep.mubr.bf16.mxu0 0
          %673 = vmatmul.mubr.bf16.gmra.mrb[0].mxu0 %v525
          %v674 = vpop.f32.mrb[0].mxu0
          %v675 = vadd.f32 0.0, %v674
          %v676 = vpop.f32.mrb[0].mxu0
          %v677 = vpop.f32.mrb[0].mxu0
          %v678 = vadd.f32 0.0, %v677
          %v679 = vpop.f32.mrb[0].mxu0
          %680 = vmatprep.mubr.bf16.mxu0 0
          %681 = vmatmul.mubr.bf16.gmra.mrb[0].mxu0 %v526
          %v682 = vpop.f32.mrb[0].mxu0
          %v683 = vadd.f32 0.0, %v682
          %v684 = vpop.f32.mrb[0].mxu0
          %v685 = vpop.f32.mrb[0].mxu0
          %v686 = vadd.f32 0.0, %v685
          %v687 = vpop.f32.mrb[0].mxu0
          %688 = vmatprep.mubr.bf16.mxu0 0
          %689 = vmatmul.mubr.bf16.gmra.mrb[0].mxu0 %v527
          %v690 = vpop.f32.mrb[0].mxu0
          %v691 = vadd.f32 0.0, %v690
          %v692 = vpop.f32.mrb[0].mxu0
          %v693 = vpop.f32.mrb[0].mxu0
          %v694 = vadd.f32 0.0, %v693
          %v695 = vpop.f32.mrb[0].mxu0
          %696 = vmatprep.mubr.bf16.mxu0 0
          %697 = vmatmul.mubr.bf16.gmra.mrb[0].mxu0 %v528
          %v698 = vpop.f32.mrb[0].mxu0
          %v699 = vadd.f32 0.0, %v698
          %v700 = vpop.f32.mrb[0].mxu0
          %v701 = vpop.f32.mrb[0].mxu0
          %v702 = vadd.f32 0.0, %v701
          %v703 = vpop.f32.mrb[0].mxu0
          %704 = vmatprep.mubr.bf16.mxu0 0
          %705 = vmatmul.mubr.bf16.gmra.mrb[0].mxu0 %v529
          %v706 = vpop.f32.mrb[0].mxu0
          %v707 = vadd.f32 0.0, %v706
          %v708 = vpop.f32.mrb[0].mxu0
          %v709 = vpop.f32.mrb[0].mxu0
          %v710 = vadd.f32 0.0, %v709
          %v711 = vpop.f32.mrb[0].mxu0
          %712 = vmatprep.mubr.bf16.mxu0 0
          %713 = vmatmul.mubr.bf16.gmra.mrb[0].mxu0 %v530
          %v714 = vpop.f32.mrb[0].mxu0
          %v715 = vadd.f32 0.0, %v714
          %v716 = vpop.f32.mrb[0].mxu0
          %v717 = vpop.f32.mrb[0].mxu0
          %v718 = vadd.f32 0.0, %v717
          %v719 = vpop.f32.mrb[0].mxu0
          %720 = vmatprep.mubr.bf16.mxu0 0
          %721 = vmatmul.mubr.bf16.gmra.mrb[0].mxu0 %v531
          %v722 = vpop.f32.mrb[0].mxu0
          %v723 = vadd.f32 0.0, %v722
          %v724 = vpop.f32.mrb[0].mxu0
          %v725 = vpop.f32.mrb[0].mxu0
          %v726 = vadd.f32 0.0, %v725
          %v727 = vpop.f32.mrb[0].mxu0
          %728 = vmatprep.mubr.bf16.mxu0 0
          %729 = vmatmul.mubr.bf16.gmra.mrb[0].mxu0 %v532
          %v730 = vpop.f32.mrb[0].mxu0
          %v731 = vadd.f32 0.0, %v730
          %v732 = vpop.f32.mrb[0].mxu0
          %v733 = vpop.f32.mrb[0].mxu0
          %v734 = vadd.f32 0.0, %v733
          %v735 = vpop.f32.mrb[0].mxu0
          %736 = vmatprep.mubr.bf16.mxu0 0
          %737 = vmatmul.mubr.bf16.gmra.mrb[0].mxu0 %v533
          %v738 = vpop.f32.mrb[0].mxu0
          %v739 = vadd.f32 0.0, %v738
          %v740 = vpop.f32.mrb[0].mxu0
          %v741 = vpop.f32.mrb[0].mxu0
          %v742 = vadd.f32 0.0, %v741
          %v743 = vpop.f32.mrb[0].mxu0
          %744 = vmatprep.mubr.bf16.mxu0 0
          %745 = vmatmul.mubr.bf16.gmra.mrb[0].mxu0 %v534
          %v746 = vpop.f32.mrb[0].mxu0
          %v747 = vadd.f32 0.0, %v746
          %v748 = vpop.f32.mrb[0].mxu0
          %v749 = vpop.f32.mrb[0].mxu0
          %v750 = vadd.f32 0.0, %v749
          %v751 = vpop.f32.mrb[0].mxu0
          %752 = vmatprep.mubr.bf16.mxu0 0
          %753 = vmatmul.mubr.bf16.gmra.mrb[0].mxu0 %v535
          %v754 = vpop.f32.mrb[0].mxu0
          %v755 = vadd.f32 0.0, %v754
          %v756 = vpop.f32.mrb[0].mxu0
          %v757 = vpop.f32.mrb[0].mxu0
          %v758 = vadd.f32 0.0, %v757
          %v759 = vpop.f32.mrb[0].mxu0
          %760 = vdwg.mxu0
          %v761 = vpack.c.bf16 %v638, %v635
          %v762 = vpack.c.bf16 %v646, %v643
          %v763 = vpack.c.bf16 %v654, %v651
          %v764 = vpack.c.bf16 %v662, %v659
          %v765 = vpack.c.bf16 %v670, %v667
          %v766 = vpack.c.bf16 %v678, %v675
          %v767 = vpack.c.bf16 %v686, %v683
          %v768 = vpack.c.bf16 %v694, %v691
          %v769 = vpack.c.bf16 %v702, %v699
          %v770 = vpack.c.bf16 %v710, %v707
          %v771 = vpack.c.bf16 %v718, %v715
          %v772 = vpack.c.bf16 %v726, %v723
          %v773 = vpack.c.bf16 %v734, %v731
          %v774 = vpack.c.bf16 %v742, %v739
          %v775 = vpack.c.bf16 %v750, %v747
          %v776 = vpack.c.bf16 %v758, %v755
          %s777 = sshra.s32 %s403, 4
          %s778 = sand.u32 %s403, 15
          %s779 = smul.addr %s777, 8
          %s780 = scalar_lea.vmem [#allocation3], %s779
          %781 = vst [vmem:[%s780] sm:$0xff] %v761
          %782 = vst [vmem:[%s780 + $0x8] sm:$0xff] %v762
          %783 = vst [vmem:[%s780 + $0x10] sm:$0xff] %v763
          %784 = vst [vmem:[%s780 + $0x18] sm:$0xff] %v764
          %785 = vst [vmem:[%s780 + $0x20] sm:$0xff] %v765
          %786 = vst [vmem:[%s780 + $0x28] sm:$0xff] %v766
          %787 = vst [vmem:[%s780 + $0x30] sm:$0xff] %v767
          %788 = vst [vmem:[%s780 + $0x38] sm:$0xff] %v768
          %789 = vst [vmem:[%s780 + $0x40] sm:$0xff] %v769
          %790 = vst [vmem:[%s780 + $0x48] sm:$0xff] %v770
          %791 = vst [vmem:[%s780 + $0x50] sm:$0xff] %v771
          %792 = vst [vmem:[%s780 + $0x58] sm:$0xff] %v772
          %793 = vst [vmem:[%s780 + $0x60] sm:$0xff] %v773
          %794 = vst [vmem:[%s780 + $0x68] sm:$0xff] %v774
          %795 = vst [vmem:[%s780 + $0x70] sm:$0xff] %v775
          %796 = vst [vmem:[%s780 + $0x78] sm:$0xff] %v776
        $region56: #{simple_gcn_forward.1} parent=51 // pred_fallthru
          _
        %v797 = vld [vmem:[#allocation2] sm:$0xff]
        %v798 = vld [vmem:[#allocation2 + $0x8] sm:$0xff]
        %v799 = vld [vmem:[#allocation2 + $0x10] sm:$0xff]
        %v800 = vld [vmem:[#allocation2 + $0x18] sm:$0xff]
        %v801 = vld [vmem:[#allocation2 + $0x20] sm:$0xff]
        %v802 = vld [vmem:[#allocation2 + $0x28] sm:$0xff]
        %v803 = vld [vmem:[#allocation2 + $0x30] sm:$0xff]
        %v804 = vld [vmem:[#allocation2 + $0x38] sm:$0xff]
        %v805 = vld [vmem:[#allocation2 + $0x40] sm:$0xff]
        %v806 = vld [vmem:[#allocation2 + $0x48] sm:$0xff]
        %v807 = vld [vmem:[#allocation2 + $0x50] sm:$0xff]
        %v808 = vld [vmem:[#allocation2 + $0x58] sm:$0xff]
        %v809 = vld [vmem:[#allocation2 + $0x60] sm:$0xff]
        %v810 = vld [vmem:[#allocation2 + $0x68] sm:$0xff]
        %v811 = vld [vmem:[#allocation2 + $0x70] sm:$0xff]
        %v812 = vld [vmem:[#allocation2 + $0x78] sm:$0xff]
        %v813 = vld [vmem:[#allocation2 + $0x80] sm:$0xff]
        %v814 = vld [vmem:[#allocation2 + $0x88] sm:$0xff]
        %v815 = vld [vmem:[#allocation2 + $0x90] sm:$0xff]
        %v816 = vld [vmem:[#allocation2 + $0x98] sm:$0xff]
        %v817 = vld [vmem:[#allocation2 + $0xa0] sm:$0xff]
        %v818 = vld [vmem:[#allocation2 + $0xa8] sm:$0xff]
        %v819 = vld [vmem:[#allocation2 + $0xb0] sm:$0xff]
        %v820 = vld [vmem:[#allocation2 + $0xb8] sm:$0xff]
        %v821 = vld [vmem:[#allocation2 + $0xc0] sm:$0xff]
        %v822 = vld [vmem:[#allocation2 + $0xc8] sm:$0xff]
        %v823 = vld [vmem:[#allocation2 + $0xd0] sm:$0xff]
        %v824 = vld [vmem:[#allocation2 + $0xd8] sm:$0xff]
        %v825 = vld [vmem:[#allocation2 + $0xe0] sm:$0xff]
        %v826 = vld [vmem:[#allocation2 + $0xe8] sm:$0xff]
        %v827 = vld [vmem:[#allocation2 + $0xf0] sm:$0xff]
        %v828 = vld [vmem:[#allocation2 + $0xf8] sm:$0xff]
        %v829 = vld [vmem:[%s333] sm:$0xff]
        %v830 = vld [vmem:[%s333 + $0x8] sm:$0xff]
        %v831 = vld [vmem:[%s333 + $0x10] sm:$0xff]
        %v832 = vld [vmem:[%s333 + $0x18] sm:$0xff]
        %v833 = vld [vmem:[%s333 + $0x20] sm:$0xff]
        %v834 = vld [vmem:[%s333 + $0x28] sm:$0xff]
        %v835 = vld [vmem:[%s333 + $0x30] sm:$0xff]
        %v836 = vld [vmem:[%s333 + $0x38] sm:$0xff]
        %v837 = vld [vmem:[%s333 + $0x40] sm:$0xff]
        %v838 = vld [vmem:[%s333 + $0x48] sm:$0xff]
        %v839 = vld [vmem:[%s333 + $0x50] sm:$0xff]
        %v840 = vld [vmem:[%s333 + $0x58] sm:$0xff]
        %v841 = vld [vmem:[%s333 + $0x60] sm:$0xff]
        %v842 = vld [vmem:[%s333 + $0x68] sm:$0xff]
        %v843 = vld [vmem:[%s333 + $0x70] sm:$0xff]
        %v844 = vld [vmem:[%s333 + $0x78] sm:$0xff]
        %v845 = vld [vmem:[%s333 + $0x80] sm:$0xff]
        %v846 = vld [vmem:[%s333 + $0x88] sm:$0xff]
        %v847 = vld [vmem:[%s333 + $0x90] sm:$0xff]
        %v848 = vld [vmem:[%s333 + $0x98] sm:$0xff]
        %v849 = vld [vmem:[%s333 + $0xa0] sm:$0xff]
        %v850 = vld [vmem:[%s333 + $0xa8] sm:$0xff]
        %v851 = vld [vmem:[%s333 + $0xb0] sm:$0xff]
        %v852 = vld [vmem:[%s333 + $0xb8] sm:$0xff]
        %v853 = vld [vmem:[%s333 + $0xc0] sm:$0xff]
        %v854 = vld [vmem:[%s333 + $0xc8] sm:$0xff]
        %v855 = vld [vmem:[%s333 + $0xd0] sm:$0xff]
        %v856 = vld [vmem:[%s333 + $0xd8] sm:$0xff]
        %v857 = vld [vmem:[%s333 + $0xe0] sm:$0xff]
        %v858 = vld [vmem:[%s333 + $0xe8] sm:$0xff]
        %v859 = vld [vmem:[%s333 + $0xf0] sm:$0xff]
        %v860 = vld [vmem:[%s333 + $0xf8] sm:$0xff]
        %s861 = sshra.s32 %s403, 4
        %s862 = sand.u32 %s403, 15
        %s863 = smul.addr %s861, 8
        %s864 = scalar_lea.vmem [#allocation3], %s863
        %v865 = vld [vmem:[%s864] sm:$0xff]
        %v866 = vld [vmem:[%s864 + $0x8] sm:$0xff]
        %v867 = vld [vmem:[%s864 + $0x10] sm:$0xff]
        %v868 = vld [vmem:[%s864 + $0x18] sm:$0xff]
        %v869 = vld [vmem:[%s864 + $0x20] sm:$0xff]
        %v870 = vld [vmem:[%s864 + $0x28] sm:$0xff]
        %v871 = vld [vmem:[%s864 + $0x30] sm:$0xff]
        %v872 = vld [vmem:[%s864 + $0x38] sm:$0xff]
        %v873 = vld [vmem:[%s864 + $0x40] sm:$0xff]
        %v874 = vld [vmem:[%s864 + $0x48] sm:$0xff]
        %v875 = vld [vmem:[%s864 + $0x50] sm:$0xff]
        %v876 = vld [vmem:[%s864 + $0x58] sm:$0xff]
        %v877 = vld [vmem:[%s864 + $0x60] sm:$0xff]
        %v878 = vld [vmem:[%s864 + $0x68] sm:$0xff]
        %v879 = vld [vmem:[%s864 + $0x70] sm:$0xff]
        %v880 = vld [vmem:[%s864 + $0x78] sm:$0xff]
        %v913 = vunpack.c.l.b16 %v829
        %v914 = vunpack.c.h.b16 %v829
        %v915 = vunpack.c.l.b16 %v830
        %v916 = vunpack.c.h.b16 %v830
        %v917 = vunpack.c.l.b16 %v831
        %v918 = vunpack.c.h.b16 %v831
        %v919 = vunpack.c.l.b16 %v832
        %v920 = vunpack.c.h.b16 %v832
        %v921 = vunpack.c.l.b16 %v833
        %v922 = vunpack.c.h.b16 %v833
        %v923 = vunpack.c.l.b16 %v834
        %v924 = vunpack.c.h.b16 %v834
        %v925 = vunpack.c.l.b16 %v835
        %v926 = vunpack.c.h.b16 %v835
        %v927 = vunpack.c.l.b16 %v836
        %v928 = vunpack.c.h.b16 %v836
        %v929 = vunpack.c.l.b16 %v837
        %v930 = vunpack.c.h.b16 %v837
        %v931 = vunpack.c.l.b16 %v838
        %v932 = vunpack.c.h.b16 %v838
        %v933 = vunpack.c.l.b16 %v839
        %v934 = vunpack.c.h.b16 %v839
        %v935 = vunpack.c.l.b16 %v840
        %v936 = vunpack.c.h.b16 %v840
        %v937 = vunpack.c.l.b16 %v841
        %v938 = vunpack.c.h.b16 %v841
        %v939 = vunpack.c.l.b16 %v842
        %v940 = vunpack.c.h.b16 %v842
        %v941 = vunpack.c.l.b16 %v843
        %v942 = vunpack.c.h.b16 %v843
        %v943 = vunpack.c.l.b16 %v844
        %v944 = vunpack.c.h.b16 %v844
        %v945 = vunpack.c.l.b16 %v845
        %v946 = vunpack.c.h.b16 %v845
        %v947 = vunpack.c.l.b16 %v846
        %v948 = vunpack.c.h.b16 %v846
        %v949 = vunpack.c.l.b16 %v847
        %v950 = vunpack.c.h.b16 %v847
        %v951 = vunpack.c.l.b16 %v848
        %v952 = vunpack.c.h.b16 %v848
        %v953 = vunpack.c.l.b16 %v849
        %v954 = vunpack.c.h.b16 %v849
        %v955 = vunpack.c.l.b16 %v850
        %v956 = vunpack.c.h.b16 %v850
        %v957 = vunpack.c.l.b16 %v851
        %v958 = vunpack.c.h.b16 %v851
        %v959 = vunpack.c.l.b16 %v852
        %v960 = vunpack.c.h.b16 %v852
        %v961 = vunpack.c.l.b16 %v853
        %v962 = vunpack.c.h.b16 %v853
        %v963 = vunpack.c.l.b16 %v854
        %v964 = vunpack.c.h.b16 %v854
        %v965 = vunpack.c.l.b16 %v855
        %v966 = vunpack.c.h.b16 %v855
        %v967 = vunpack.c.l.b16 %v856
        %v968 = vunpack.c.h.b16 %v856
        %v969 = vunpack.c.l.b16 %v857
        %v970 = vunpack.c.h.b16 %v857
        %v971 = vunpack.c.l.b16 %v858
        %v972 = vunpack.c.h.b16 %v858
        %v973 = vunpack.c.l.b16 %v859
        %v974 = vunpack.c.h.b16 %v859
        %v975 = vunpack.c.l.b16 %v860
        %v976 = vunpack.c.h.b16 %v860
        %v977 = vpack.c.b16 %v915, %v913
        %v978 = vpack.c.b16 %v916, %v914
        %v979 = vpack.c.b16 %v919, %v917
        %v980 = vpack.c.b16 %v920, %v918
        %v981 = vpack.c.b16 %v923, %v921
        %v982 = vpack.c.b16 %v924, %v922
        %v983 = vpack.c.b16 %v927, %v925
        %v984 = vpack.c.b16 %v928, %v926
        %v985 = vpack.c.b16 %v931, %v929
        %v986 = vpack.c.b16 %v932, %v930
        %v987 = vpack.c.b16 %v935, %v933
        %v988 = vpack.c.b16 %v936, %v934
        %v989 = vpack.c.b16 %v939, %v937
        %v990 = vpack.c.b16 %v940, %v938
        %v991 = vpack.c.b16 %v943, %v941
        %v992 = vpack.c.b16 %v944, %v942
        %v993 = vpack.c.b16 %v947, %v945
        %v994 = vpack.c.b16 %v948, %v946
        %v995 = vpack.c.b16 %v951, %v949
        %v996 = vpack.c.b16 %v952, %v950
        %v997 = vpack.c.b16 %v955, %v953
        %v998 = vpack.c.b16 %v956, %v954
        %v999 = vpack.c.b16 %v959, %v957
        %v1000 = vpack.c.b16 %v960, %v958
        %v1001 = vpack.c.b16 %v963, %v961
        %v1002 = vpack.c.b16 %v964, %v962
        %v1003 = vpack.c.b16 %v967, %v965
        %v1004 = vpack.c.b16 %v968, %v966
        %v1005 = vpack.c.b16 %v971, %v969
        %v1006 = vpack.c.b16 %v972, %v970
        %v1007 = vpack.c.b16 %v975, %v973
        %v1008 = vpack.c.b16 %v976, %v974
        %1041 = vmatprep.subr.bf16.mxu0 0
        %1042 = vmatpush1.bf16.msra.mxu0 %v865
        %1043 = vmatprep.subr.bf16.mxu0 0
        %1044 = vmatpush1.bf16.msra.mxu0 %v866
        %1045 = vmatprep.subr.bf16.mxu0 0
        %1046 = vmatpush1.bf16.msra.mxu0 %v867
        %1047 = vmatprep.subr.bf16.mxu0 0
        %1048 = vmatpush1.bf16.msra.mxu0 %v868
        %1049 = vmatprep.subr.bf16.mxu0 0
        %1050 = vmatpush1.bf16.msra.mxu0 %v869
        %1051 = vmatprep.subr.bf16.mxu0 0
        %1052 = vmatpush1.bf16.msra.mxu0 %v870
        %1053 = vmatprep.subr.bf16.mxu0 0
        %1054 = vmatpush1.bf16.msra.mxu0 %v871
        %1055 = vmatprep.subr.bf16.mxu0 0
        %1056 = vmatpush1.bf16.msra.mxu0 %v872
        %1057 = vmatprep.subr.bf16.mxu0 0
        %1058 = vmatpush1.bf16.msra.mxu0 %v873
        %1059 = vmatprep.subr.bf16.mxu0 0
        %1060 = vmatpush1.bf16.msra.mxu0 %v874
        %1061 = vmatprep.subr.bf16.mxu0 0
        %1062 = vmatpush1.bf16.msra.mxu0 %v875
        %1063 = vmatprep.subr.bf16.mxu0 0
        %1064 = vmatpush1.bf16.msra.mxu0 %v876
        %1065 = vmatprep.subr.bf16.mxu0 0
        %1066 = vmatpush1.bf16.msra.mxu0 %v877
        %1067 = vmatprep.subr.bf16.mxu0 0
        %1068 = vmatpush1.bf16.msra.mxu0 %v878
        %1069 = vmatprep.subr.bf16.mxu0 0
        %1070 = vmatpush1.bf16.msra.mxu0 %v879
        %1071 = vmatprep.subr.bf16.mxu0 0
        %1072 = vmatpush1.bf16.msra.mxu0 %v880
        %1073 = vmatprep.mubr.bf16.mxu0 %v978
        %1074 = vmatmul.mubr.bf16.gmra.mrb[0].mxu0 %v977
        %v1075 = vpop.f32.mrb[0].mxu0
        %v1076 = vadd.f32 0.0, %v1075
        %v1077 = vpop.f32.mrb[0].mxu0
        %v1078 = vpop.f32.mrb[0].mxu0
        %v1079 = vadd.f32 0.0, %v1078
        %v1080 = vpop.f32.mrb[0].mxu0
        %1081 = vmatprep.mubr.bf16.mxu0 %v980
        %1082 = vmatmul.mubr.bf16.gmra.mrb[0].mxu0 %v979
        %v1083 = vpop.f32.mrb[0].mxu0
        %v1084 = vadd.f32 0.0, %v1083
        %v1085 = vpop.f32.mrb[0].mxu0
        %v1086 = vpop.f32.mrb[0].mxu0
        %v1087 = vadd.f32 0.0, %v1086
        %v1088 = vpop.f32.mrb[0].mxu0
        %1089 = vmatprep.mubr.bf16.mxu0 %v982
        %1090 = vmatmul.mubr.bf16.gmra.mrb[0].mxu0 %v981
        %v1091 = vpop.f32.mrb[0].mxu0
        %v1092 = vadd.f32 0.0, %v1091
        %v1093 = vpop.f32.mrb[0].mxu0
        %v1094 = vpop.f32.mrb[0].mxu0
        %v1095 = vadd.f32 0.0, %v1094
        %v1096 = vpop.f32.mrb[0].mxu0
        %1097 = vmatprep.mubr.bf16.mxu0 %v984
        %1098 = vmatmul.mubr.bf16.gmra.mrb[0].mxu0 %v983
        %v1099 = vpop.f32.mrb[0].mxu0
        %v1100 = vadd.f32 0.0, %v1099
        %v1101 = vpop.f32.mrb[0].mxu0
        %v1102 = vpop.f32.mrb[0].mxu0
        %v1103 = vadd.f32 0.0, %v1102
        %v1104 = vpop.f32.mrb[0].mxu0
        %1105 = vmatprep.mubr.bf16.mxu0 %v986
        %1106 = vmatmul.mubr.bf16.gmra.mrb[0].mxu0 %v985
        %v1107 = vpop.f32.mrb[0].mxu0
        %v1108 = vadd.f32 0.0, %v1107
        %v1109 = vpop.f32.mrb[0].mxu0
        %v1110 = vpop.f32.mrb[0].mxu0
        %v1111 = vadd.f32 0.0, %v1110
        %v1112 = vpop.f32.mrb[0].mxu0
        %1113 = vmatprep.mubr.bf16.mxu0 %v988
        %1114 = vmatmul.mubr.bf16.gmra.mrb[0].mxu0 %v987
        %v1115 = vpop.f32.mrb[0].mxu0
        %v1116 = vadd.f32 0.0, %v1115
        %v1117 = vpop.f32.mrb[0].mxu0
        %v1118 = vpop.f32.mrb[0].mxu0
        %v1119 = vadd.f32 0.0, %v1118
        %v1120 = vpop.f32.mrb[0].mxu0
        %1121 = vmatprep.mubr.bf16.mxu0 %v990
        %1122 = vmatmul.mubr.bf16.gmra.mrb[0].mxu0 %v989
        %v1123 = vpop.f32.mrb[0].mxu0
        %v1124 = vadd.f32 0.0, %v1123
        %v1125 = vpop.f32.mrb[0].mxu0
        %v1126 = vpop.f32.mrb[0].mxu0
        %v1127 = vadd.f32 0.0, %v1126
        %v1128 = vpop.f32.mrb[0].mxu0
        %1129 = vmatprep.mubr.bf16.mxu0 %v992
        %1130 = vmatmul.mubr.bf16.gmra.mrb[0].mxu0 %v991
        %v1131 = vpop.f32.mrb[0].mxu0
        %v1132 = vadd.f32 0.0, %v1131
        %v1133 = vpop.f32.mrb[0].mxu0
        %v1134 = vpop.f32.mrb[0].mxu0
        %v1135 = vadd.f32 0.0, %v1134
        %v1136 = vpop.f32.mrb[0].mxu0
        %1137 = vmatprep.mubr.bf16.mxu0 %v994
        %1138 = vmatmul.mubr.bf16.gmra.mrb[0].mxu0 %v993
        %v1139 = vpop.f32.mrb[0].mxu0
        %v1140 = vadd.f32 0.0, %v1139
        %v1141 = vpop.f32.mrb[0].mxu0
        %v1142 = vpop.f32.mrb[0].mxu0
        %v1143 = vadd.f32 0.0, %v1142
        %v1144 = vpop.f32.mrb[0].mxu0
        %1145 = vmatprep.mubr.bf16.mxu0 %v996
        %1146 = vmatmul.mubr.bf16.gmra.mrb[0].mxu0 %v995
        %v1147 = vpop.f32.mrb[0].mxu0
        %v1148 = vadd.f32 0.0, %v1147
        %v1149 = vpop.f32.mrb[0].mxu0
        %v1150 = vpop.f32.mrb[0].mxu0
        %v1151 = vadd.f32 0.0, %v1150
        %v1152 = vpop.f32.mrb[0].mxu0
        %1153 = vmatprep.mubr.bf16.mxu0 %v998
        %1154 = vmatmul.mubr.bf16.gmra.mrb[0].mxu0 %v997
        %v1155 = vpop.f32.mrb[0].mxu0
        %v1156 = vadd.f32 0.0, %v1155
        %v1157 = vpop.f32.mrb[0].mxu0
        %v1158 = vpop.f32.mrb[0].mxu0
        %v1159 = vadd.f32 0.0, %v1158
        %v1160 = vpop.f32.mrb[0].mxu0
        %1161 = vmatprep.mubr.bf16.mxu0 %v1000
        %1162 = vmatmul.mubr.bf16.gmra.mrb[0].mxu0 %v999
        %v1163 = vpop.f32.mrb[0].mxu0
        %v1164 = vadd.f32 0.0, %v1163
        %v1165 = vpop.f32.mrb[0].mxu0
        %v1166 = vpop.f32.mrb[0].mxu0
        %v1167 = vadd.f32 0.0, %v1166
        %v1168 = vpop.f32.mrb[0].mxu0
        %1169 = vmatprep.mubr.bf16.mxu0 %v1002
        %1170 = vmatmul.mubr.bf16.gmra.mrb[0].mxu0 %v1001
        %v1171 = vpop.f32.mrb[0].mxu0
        %v1172 = vadd.f32 0.0, %v1171
        %v1173 = vpop.f32.mrb[0].mxu0
        %v1174 = vpop.f32.mrb[0].mxu0
        %v1175 = vadd.f32 0.0, %v1174
        %v1176 = vpop.f32.mrb[0].mxu0
        %1177 = vmatprep.mubr.bf16.mxu0 %v1004
        %1178 = vmatmul.mubr.bf16.gmra.mrb[0].mxu0 %v1003
        %v1179 = vpop.f32.mrb[0].mxu0
        %v1180 = vadd.f32 0.0, %v1179
        %v1181 = vpop.f32.mrb[0].mxu0
        %v1182 = vpop.f32.mrb[0].mxu0
        %v1183 = vadd.f32 0.0, %v1182
        %v1184 = vpop.f32.mrb[0].mxu0
        %1185 = vmatprep.mubr.bf16.mxu0 %v1006
        %1186 = vmatmul.mubr.bf16.gmra.mrb[0].mxu0 %v1005
        %v1187 = vpop.f32.mrb[0].mxu0
        %v1188 = vadd.f32 0.0, %v1187
        %v1189 = vpop.f32.mrb[0].mxu0
        %v1190 = vpop.f32.mrb[0].mxu0
        %v1191 = vadd.f32 0.0, %v1190
        %v1192 = vpop.f32.mrb[0].mxu0
        %1193 = vmatprep.mubr.bf16.mxu0 %v1008
        %1194 = vmatmul.mubr.bf16.gmra.mrb[0].mxu0 %v1007
        %v1195 = vpop.f32.mrb[0].mxu0
        %v1196 = vadd.f32 0.0, %v1195
        %v1197 = vpop.f32.mrb[0].mxu0
        %v1198 = vpop.f32.mrb[0].mxu0
        %v1199 = vadd.f32 0.0, %v1198
        %v1200 = vpop.f32.mrb[0].mxu0
        %1201 = vdwg.mxu0
        %v1202 = vadd.f32 %v797, %v1076
        %v1203 = vadd.f32 %v798, %v1079
        %v1204 = vadd.f32 %v799, %v1084
        %v1205 = vadd.f32 %v800, %v1087
        %v1206 = vadd.f32 %v801, %v1092
        %v1207 = vadd.f32 %v802, %v1095
        %v1208 = vadd.f32 %v803, %v1100
        %v1209 = vadd.f32 %v804, %v1103
        %v1210 = vadd.f32 %v805, %v1108
        %v1211 = vadd.f32 %v806, %v1111
        %v1212 = vadd.f32 %v807, %v1116
        %v1213 = vadd.f32 %v808, %v1119
        %v1214 = vadd.f32 %v809, %v1124
        %v1215 = vadd.f32 %v810, %v1127
        %v1216 = vadd.f32 %v811, %v1132
        %v1217 = vadd.f32 %v812, %v1135
        %v1218 = vadd.f32 %v813, %v1140
        %v1219 = vadd.f32 %v814, %v1143
        %v1220 = vadd.f32 %v815, %v1148
        %v1221 = vadd.f32 %v816, %v1151
        %v1222 = vadd.f32 %v817, %v1156
        %v1223 = vadd.f32 %v818, %v1159
        %v1224 = vadd.f32 %v819, %v1164
        %v1225 = vadd.f32 %v820, %v1167
        %v1226 = vadd.f32 %v821, %v1172
        %v1227 = vadd.f32 %v822, %v1175
        %v1228 = vadd.f32 %v823, %v1180
        %v1229 = vadd.f32 %v824, %v1183
        %v1230 = vadd.f32 %v825, %v1188
        %v1231 = vadd.f32 %v826, %v1191
        %v1232 = vadd.f32 %v827, %v1196
        %v1233 = vadd.f32 %v828, %v1199
        %1234 = vst [vmem:[#allocation2] sm:$0xff] %v1202
        %1235 = vst [vmem:[#allocation2 + $0x8] sm:$0xff] %v1203
        %1236 = vst [vmem:[#allocation2 + $0x10] sm:$0xff] %v1204
        %1237 = vst [vmem:[#allocation2 + $0x18] sm:$0xff] %v1205
        %1238 = vst [vmem:[#allocation2 + $0x20] sm:$0xff] %v1206
        %1239 = vst [vmem:[#allocation2 + $0x28] sm:$0xff] %v1207
        %1240 = vst [vmem:[#allocation2 + $0x30] sm:$0xff] %v1208
        %1241 = vst [vmem:[#allocation2 + $0x38] sm:$0xff] %v1209
        %1242 = vst [vmem:[#allocation2 + $0x40] sm:$0xff] %v1210
        %1243 = vst [vmem:[#allocation2 + $0x48] sm:$0xff] %v1211
        %1244 = vst [vmem:[#allocation2 + $0x50] sm:$0xff] %v1212
        %1245 = vst [vmem:[#allocation2 + $0x58] sm:$0xff] %v1213
        %1246 = vst [vmem:[#allocation2 + $0x60] sm:$0xff] %v1214
        %1247 = vst [vmem:[#allocation2 + $0x68] sm:$0xff] %v1215
        %1248 = vst [vmem:[#allocation2 + $0x70] sm:$0xff] %v1216
        %1249 = vst [vmem:[#allocation2 + $0x78] sm:$0xff] %v1217
        %1250 = vst [vmem:[#allocation2 + $0x80] sm:$0xff] %v1218
        %1251 = vst [vmem:[#allocation2 + $0x88] sm:$0xff] %v1219
        %1252 = vst [vmem:[#allocation2 + $0x90] sm:$0xff] %v1220
        %1253 = vst [vmem:[#allocation2 + $0x98] sm:$0xff] %v1221
        %1254 = vst [vmem:[#allocation2 + $0xa0] sm:$0xff] %v1222
        %1255 = vst [vmem:[#allocation2 + $0xa8] sm:$0xff] %v1223
        %1256 = vst [vmem:[#allocation2 + $0xb0] sm:$0xff] %v1224
        %1257 = vst [vmem:[#allocation2 + $0xb8] sm:$0xff] %v1225
        %1258 = vst [vmem:[#allocation2 + $0xc0] sm:$0xff] %v1226
        %1259 = vst [vmem:[#allocation2 + $0xc8] sm:$0xff] %v1227
        %1260 = vst [vmem:[#allocation2 + $0xd0] sm:$0xff] %v1228
        %1261 = vst [vmem:[#allocation2 + $0xd8] sm:$0xff] %v1229
        %1262 = vst [vmem:[#allocation2 + $0xe0] sm:$0xff] %v1230
        %1263 = vst [vmem:[#allocation2 + $0xe8] sm:$0xff] %v1231
        %1264 = vst [vmem:[#allocation2 + $0xf0] sm:$0xff] %v1232
        %1265 = vst [vmem:[#allocation2 + $0xf8] sm:$0xff] %v1233
        // Predicated region
        $region57: #{simple_gcn_forward.1} parent=51 // pred_check
          %p1266 = pneg %p363
        $region58: #{simple_gcn_forward.1} parent=51 // pred_check_branch
          %1268 = sbr.rel (%p1266) target = $region60
        $region59: #{simple_gcn_forward.1} parent=51 // pred_region
          %v1269 = vld [vmem:[#allocation2] sm:$0xff]
          %v1270 = vld [vmem:[#allocation2 + $0x8] sm:$0xff]
          %v1271 = vld [vmem:[#allocation2 + $0x10] sm:$0xff]
          %v1272 = vld [vmem:[#allocation2 + $0x18] sm:$0xff]
          %v1273 = vld [vmem:[#allocation2 + $0x20] sm:$0xff]
          %v1274 = vld [vmem:[#allocation2 + $0x28] sm:$0xff]
          %v1275 = vld [vmem:[#allocation2 + $0x30] sm:$0xff]
          %v1276 = vld [vmem:[#allocation2 + $0x38] sm:$0xff]
          %v1277 = vld [vmem:[#allocation2 + $0x40] sm:$0xff]
          %v1278 = vld [vmem:[#allocation2 + $0x48] sm:$0xff]
          %v1279 = vld [vmem:[#allocation2 + $0x50] sm:$0xff]
          %v1280 = vld [vmem:[#allocation2 + $0x58] sm:$0xff]
          %v1281 = vld [vmem:[#allocation2 + $0x60] sm:$0xff]
          %v1282 = vld [vmem:[#allocation2 + $0x68] sm:$0xff]
          %v1283 = vld [vmem:[#allocation2 + $0x70] sm:$0xff]
          %v1284 = vld [vmem:[#allocation2 + $0x78] sm:$0xff]
          %v1285 = vld [vmem:[#allocation2 + $0x80] sm:$0xff]
          %v1286 = vld [vmem:[#allocation2 + $0x88] sm:$0xff]
          %v1287 = vld [vmem:[#allocation2 + $0x90] sm:$0xff]
          %v1288 = vld [vmem:[#allocation2 + $0x98] sm:$0xff]
          %v1289 = vld [vmem:[#allocation2 + $0xa0] sm:$0xff]
          %v1290 = vld [vmem:[#allocation2 + $0xa8] sm:$0xff]
          %v1291 = vld [vmem:[#allocation2 + $0xb0] sm:$0xff]
          %v1292 = vld [vmem:[#allocation2 + $0xb8] sm:$0xff]
          %v1293 = vld [vmem:[#allocation2 + $0xc0] sm:$0xff]
          %v1294 = vld [vmem:[#allocation2 + $0xc8] sm:$0xff]
          %v1295 = vld [vmem:[#allocation2 + $0xd0] sm:$0xff]
          %v1296 = vld [vmem:[#allocation2 + $0xd8] sm:$0xff]
          %v1297 = vld [vmem:[#allocation2 + $0xe0] sm:$0xff]
          %v1298 = vld [vmem:[#allocation2 + $0xe8] sm:$0xff]
          %v1299 = vld [vmem:[#allocation2 + $0xf0] sm:$0xff]
          %v1300 = vld [vmem:[#allocation2 + $0xf8] sm:$0xff]
          %v1301 = vld [vmem:[%s3] sm:$0x1]
          %v1303 = vlaneseq
          %v1304 = vshrl.u32 %v1303, 7
          %v1305 = vsub.s32 0, %v1304
          %v1306 = vrot.slane %v1301, %v1305
          %v1308 = vadd.f32 %v1269, %v1306
          %v1309 = vadd.f32 %v1270, %v1306
          %v1310 = vadd.f32 %v1271, %v1306
          %v1311 = vadd.f32 %v1272, %v1306
          %v1312 = vadd.f32 %v1273, %v1306
          %v1313 = vadd.f32 %v1274, %v1306
          %v1314 = vadd.f32 %v1275, %v1306
          %v1315 = vadd.f32 %v1276, %v1306
          %v1316 = vadd.f32 %v1277, %v1306
          %v1317 = vadd.f32 %v1278, %v1306
          %v1318 = vadd.f32 %v1279, %v1306
          %v1319 = vadd.f32 %v1280, %v1306
          %v1320 = vadd.f32 %v1281, %v1306
          %v1321 = vadd.f32 %v1282, %v1306
          %v1322 = vadd.f32 %v1283, %v1306
          %v1323 = vadd.f32 %v1284, %v1306
          %v1324 = vadd.f32 %v1285, %v1306
          %v1325 = vadd.f32 %v1286, %v1306
          %v1326 = vadd.f32 %v1287, %v1306
          %v1327 = vadd.f32 %v1288, %v1306
          %v1328 = vadd.f32 %v1289, %v1306
          %v1329 = vadd.f32 %v1290, %v1306
          %v1330 = vadd.f32 %v1291, %v1306
          %v1331 = vadd.f32 %v1292, %v1306
          %v1332 = vadd.f32 %v1293, %v1306
          %v1333 = vadd.f32 %v1294, %v1306
          %v1334 = vadd.f32 %v1295, %v1306
          %v1335 = vadd.f32 %v1296, %v1306
          %v1336 = vadd.f32 %v1297, %v1306
          %v1337 = vadd.f32 %v1298, %v1306
          %v1338 = vadd.f32 %v1299, %v1306
          %v1339 = vadd.f32 %v1300, %v1306
          %v1340 = vmax.f32 %v1308, 0.0
          %v1341 = vmax.f32 %v1309, 0.0
          %v1342 = vmax.f32 %v1310, 0.0
          %v1343 = vmax.f32 %v1311, 0.0
          %v1344 = vmax.f32 %v1312, 0.0
          %v1345 = vmax.f32 %v1313, 0.0
          %v1346 = vmax.f32 %v1314, 0.0
          %v1347 = vmax.f32 %v1315, 0.0
          %v1348 = vmax.f32 %v1316, 0.0
          %v1349 = vmax.f32 %v1317, 0.0
          %v1350 = vmax.f32 %v1318, 0.0
          %v1351 = vmax.f32 %v1319, 0.0
          %v1352 = vmax.f32 %v1320, 0.0
          %v1353 = vmax.f32 %v1321, 0.0
          %v1354 = vmax.f32 %v1322, 0.0
          %v1355 = vmax.f32 %v1323, 0.0
          %v1356 = vmax.f32 %v1324, 0.0
          %v1357 = vmax.f32 %v1325, 0.0
          %v1358 = vmax.f32 %v1326, 0.0
          %v1359 = vmax.f32 %v1327, 0.0
          %v1360 = vmax.f32 %v1328, 0.0
          %v1361 = vmax.f32 %v1329, 0.0
          %v1362 = vmax.f32 %v1330, 0.0
          %v1363 = vmax.f32 %v1331, 0.0
          %v1364 = vmax.f32 %v1332, 0.0
          %v1365 = vmax.f32 %v1333, 0.0
          %v1366 = vmax.f32 %v1334, 0.0
          %v1367 = vmax.f32 %v1335, 0.0
          %v1368 = vmax.f32 %v1336, 0.0
          %v1369 = vmax.f32 %v1337, 0.0
          %v1370 = vmax.f32 %v1338, 0.0
          %v1371 = vmax.f32 %v1339, 0.0
          %s1372 = smul.u32 %s23, 256
          %v1373 = vpack.c.bf16 %v1341, %v1340
          %v1374 = vpack.c.bf16 %v1343, %v1342
          %v1375 = vpack.c.bf16 %v1345, %v1344
          %v1376 = vpack.c.bf16 %v1347, %v1346
          %v1377 = vpack.c.bf16 %v1349, %v1348
          %v1378 = vpack.c.bf16 %v1351, %v1350
          %v1379 = vpack.c.bf16 %v1353, %v1352
          %v1380 = vpack.c.bf16 %v1355, %v1354
          %v1381 = vpack.c.bf16 %v1357, %v1356
          %v1382 = vpack.c.bf16 %v1359, %v1358
          %v1383 = vpack.c.bf16 %v1361, %v1360
          %v1384 = vpack.c.bf16 %v1363, %v1362
          %v1385 = vpack.c.bf16 %v1365, %v1364
          %v1386 = vpack.c.bf16 %v1367, %v1366
          %v1387 = vpack.c.bf16 %v1369, %v1368
          %v1388 = vpack.c.bf16 %v1371, %v1370
          %v1389 = vld [vmem:[%s4] sm:$0xf]
          %v1390 = vld [vmem:[%s4 + $0x4] sm:$0xf]
          %v1391 = vld [vmem:[%s4 + $0x8] sm:$0xf]
          %v1392 = vld [vmem:[%s4 + $0xc] sm:$0xf]
          %v1393 = vld [vmem:[%s4 + $0x10] sm:$0xf]
          %v1394 = vld [vmem:[%s4 + $0x14] sm:$0xf]
          %v1395 = vld [vmem:[%s4 + $0x18] sm:$0xf]
          %v1396 = vld [vmem:[%s4 + $0x1c] sm:$0xf]
          %v1397 = vld [vmem:[%s4 + $0x20] sm:$0xf]
          %v1398 = vld [vmem:[%s4 + $0x24] sm:$0xf]
          %v1399 = vld [vmem:[%s4 + $0x28] sm:$0xf]
          %v1400 = vld [vmem:[%s4 + $0x2c] sm:$0xf]
          %v1401 = vld [vmem:[%s4 + $0x30] sm:$0xf]
          %v1402 = vld [vmem:[%s4 + $0x34] sm:$0xf]
          %v1403 = vld [vmem:[%s4 + $0x38] sm:$0xf]
          %v1404 = vld [vmem:[%s4 + $0x3c] sm:$0xf]
          %v1421 = vunpack.c.l.b16 %v1389
          %v1422 = vunpack.c.l.b16 %v1390
          %v1423 = vunpack.c.l.b16 %v1391
          %v1424 = vunpack.c.l.b16 %v1392
          %v1425 = vunpack.c.l.b16 %v1393
          %v1426 = vunpack.c.l.b16 %v1394
          %v1427 = vunpack.c.l.b16 %v1395
          %v1428 = vunpack.c.l.b16 %v1396
          %v1429 = vunpack.c.l.b16 %v1397
          %v1430 = vunpack.c.l.b16 %v1398
          %v1431 = vunpack.c.l.b16 %v1399
          %v1432 = vunpack.c.l.b16 %v1400
          %v1433 = vunpack.c.l.b16 %v1401
          %v1434 = vunpack.c.l.b16 %v1402
          %v1435 = vunpack.c.l.b16 %v1403
          %v1436 = vunpack.c.l.b16 %v1404
          %v1437 = vpack.c.b16 %v1422, %v1421
          %v1438 = vpack.c.b16 %v1424, %v1423
          %v1439 = vpack.c.b16 %v1426, %v1425
          %v1440 = vpack.c.b16 %v1428, %v1427
          %v1441 = vpack.c.b16 %v1430, %v1429
          %v1442 = vpack.c.b16 %v1432, %v1431
          %v1443 = vpack.c.b16 %v1434, %v1433
          %v1444 = vpack.c.b16 %v1436, %v1435
          %1453 = vmatprep.subr.bf16.mxu0 0
          %1454 = vmatpush1.bf16.msra.mxu0 %v1437
          %1455 = vmatprep.subr.bf16.mxu0 0
          %1456 = vmatpush1.bf16.msra.mxu0 %v1438
          %1457 = vmatprep.subr.bf16.mxu0 0
          %1458 = vmatpush1.bf16.msra.mxu0 %v1439
          %1459 = vmatprep.subr.bf16.mxu0 0
          %1460 = vmatpush1.bf16.msra.mxu0 %v1440
          %1461 = vmatprep.subr.bf16.mxu0 0
          %1462 = vmatpush1.bf16.msra.mxu0 %v1441
          %1463 = vmatprep.subr.bf16.mxu0 0
          %1464 = vmatpush1.bf16.msra.mxu0 %v1442
          %1465 = vmatprep.subr.bf16.mxu0 0
          %1466 = vmatpush1.bf16.msra.mxu0 %v1443
          %1467 = vmatprep.subr.bf16.mxu0 0
          %1468 = vmatpush1.bf16.msra.mxu0 %v1444
          %1469 = vmatprep.subr.bf16.mxu0 0
          %1470 = vmatpush1.bf16.msra.mxu0 0
          %1471 = vmatprep.subr.bf16.mxu0 0
          %1472 = vmatpush1.bf16.msra.mxu0 0
          %1473 = vmatprep.subr.bf16.mxu0 0
          %1474 = vmatpush1.bf16.msra.mxu0 0
          %1475 = vmatprep.subr.bf16.mxu0 0
          %1476 = vmatpush1.bf16.msra.mxu0 0
          %1477 = vmatprep.subr.bf16.mxu0 0
          %1478 = vmatpush1.bf16.msra.mxu0 0
          %1479 = vmatprep.subr.bf16.mxu0 0
          %1480 = vmatpush1.bf16.msra.mxu0 0
          %1481 = vmatprep.subr.bf16.mxu0 0
          %1482 = vmatpush1.bf16.msra.mxu0 0
          %1483 = vmatprep.subr.bf16.mxu0 0
          %1484 = vmatpush1.bf16.msra.mxu0 0
          %1485 = vmatprep.mubr.bf16.mxu0 0
          %1486 = vmatmul.mubr.bf16.gmra.mrb[0].mxu0 %v1373
          %v1487 = vpop.f32.mrb[0].mxu0
          %v1488 = vadd.f32 0.0, %v1487
          %v1489 = vpop.f32.mrb[0].mxu0
          %v1490 = vpop.f32.mrb[0].mxu0
          %v1491 = vadd.f32 0.0, %v1490
          %v1492 = vpop.f32.mrb[0].mxu0
          %1493 = vmatprep.mubr.bf16.mxu0 0
          %1494 = vmatmul.mubr.bf16.gmra.mrb[0].mxu0 %v1374
          %v1495 = vpop.f32.mrb[0].mxu0
          %v1496 = vadd.f32 0.0, %v1495
          %v1497 = vpop.f32.mrb[0].mxu0
          %v1498 = vpop.f32.mrb[0].mxu0
          %v1499 = vadd.f32 0.0, %v1498
          %v1500 = vpop.f32.mrb[0].mxu0
          %1501 = vmatprep.mubr.bf16.mxu0 0
          %1502 = vmatmul.mubr.bf16.gmra.mrb[0].mxu0 %v1375
          %v1503 = vpop.f32.mrb[0].mxu0
          %v1504 = vadd.f32 0.0, %v1503
          %v1505 = vpop.f32.mrb[0].mxu0
          %v1506 = vpop.f32.mrb[0].mxu0
          %v1507 = vadd.f32 0.0, %v1506
          %v1508 = vpop.f32.mrb[0].mxu0
          %1509 = vmatprep.mubr.bf16.mxu0 0
          %1510 = vmatmul.mubr.bf16.gmra.mrb[0].mxu0 %v1376
          %v1511 = vpop.f32.mrb[0].mxu0
          %v1512 = vadd.f32 0.0, %v1511
          %v1513 = vpop.f32.mrb[0].mxu0
          %v1514 = vpop.f32.mrb[0].mxu0
          %v1515 = vadd.f32 0.0, %v1514
          %v1516 = vpop.f32.mrb[0].mxu0
          %1517 = vmatprep.mubr.bf16.mxu0 0
          %1518 = vmatmul.mubr.bf16.gmra.mrb[0].mxu0 %v1377
          %v1519 = vpop.f32.mrb[0].mxu0
          %v1520 = vadd.f32 0.0, %v1519
          %v1521 = vpop.f32.mrb[0].mxu0
          %v1522 = vpop.f32.mrb[0].mxu0
          %v1523 = vadd.f32 0.0, %v1522
          %v1524 = vpop.f32.mrb[0].mxu0
          %1525 = vmatprep.mubr.bf16.mxu0 0
          %1526 = vmatmul.mubr.bf16.gmra.mrb[0].mxu0 %v1378
          %v1527 = vpop.f32.mrb[0].mxu0
          %v1528 = vadd.f32 0.0, %v1527
          %v1529 = vpop.f32.mrb[0].mxu0
          %v1530 = vpop.f32.mrb[0].mxu0
          %v1531 = vadd.f32 0.0, %v1530
          %v1532 = vpop.f32.mrb[0].mxu0
          %1533 = vmatprep.mubr.bf16.mxu0 0
          %1534 = vmatmul.mubr.bf16.gmra.mrb[0].mxu0 %v1379
          %v1535 = vpop.f32.mrb[0].mxu0
          %v1536 = vadd.f32 0.0, %v1535
          %v1537 = vpop.f32.mrb[0].mxu0
          %v1538 = vpop.f32.mrb[0].mxu0
          %v1539 = vadd.f32 0.0, %v1538
          %v1540 = vpop.f32.mrb[0].mxu0
          %1541 = vmatprep.mubr.bf16.mxu0 0
          %1542 = vmatmul.mubr.bf16.gmra.mrb[0].mxu0 %v1380
          %v1543 = vpop.f32.mrb[0].mxu0
          %v1544 = vadd.f32 0.0, %v1543
          %v1545 = vpop.f32.mrb[0].mxu0
          %v1546 = vpop.f32.mrb[0].mxu0
          %v1547 = vadd.f32 0.0, %v1546
          %v1548 = vpop.f32.mrb[0].mxu0
          %1549 = vmatprep.mubr.bf16.mxu0 0
          %1550 = vmatmul.mubr.bf16.gmra.mrb[0].mxu0 %v1381
          %v1551 = vpop.f32.mrb[0].mxu0
          %v1552 = vadd.f32 0.0, %v1551
          %v1553 = vpop.f32.mrb[0].mxu0
          %v1554 = vpop.f32.mrb[0].mxu0
          %v1555 = vadd.f32 0.0, %v1554
          %v1556 = vpop.f32.mrb[0].mxu0
          %1557 = vmatprep.mubr.bf16.mxu0 0
          %1558 = vmatmul.mubr.bf16.gmra.mrb[0].mxu0 %v1382
          %v1559 = vpop.f32.mrb[0].mxu0
          %v1560 = vadd.f32 0.0, %v1559
          %v1561 = vpop.f32.mrb[0].mxu0
          %v1562 = vpop.f32.mrb[0].mxu0
          %v1563 = vadd.f32 0.0, %v1562
          %v1564 = vpop.f32.mrb[0].mxu0
          %1565 = vmatprep.mubr.bf16.mxu0 0
          %1566 = vmatmul.mubr.bf16.gmra.mrb[0].mxu0 %v1383
          %v1567 = vpop.f32.mrb[0].mxu0
          %v1568 = vadd.f32 0.0, %v1567
          %v1569 = vpop.f32.mrb[0].mxu0
          %v1570 = vpop.f32.mrb[0].mxu0
          %v1571 = vadd.f32 0.0, %v1570
          %v1572 = vpop.f32.mrb[0].mxu0
          %1573 = vmatprep.mubr.bf16.mxu0 0
          %1574 = vmatmul.mubr.bf16.gmra.mrb[0].mxu0 %v1384
          %v1575 = vpop.f32.mrb[0].mxu0
          %v1576 = vadd.f32 0.0, %v1575
          %v1577 = vpop.f32.mrb[0].mxu0
          %v1578 = vpop.f32.mrb[0].mxu0
          %v1579 = vadd.f32 0.0, %v1578
          %v1580 = vpop.f32.mrb[0].mxu0
          %1581 = vmatprep.mubr.bf16.mxu0 0
          %1582 = vmatmul.mubr.bf16.gmra.mrb[0].mxu0 %v1385
          %v1583 = vpop.f32.mrb[0].mxu0
          %v1584 = vadd.f32 0.0, %v1583
          %v1585 = vpop.f32.mrb[0].mxu0
          %v1586 = vpop.f32.mrb[0].mxu0
          %v1587 = vadd.f32 0.0, %v1586
          %v1588 = vpop.f32.mrb[0].mxu0
          %1589 = vmatprep.mubr.bf16.mxu0 0
          %1590 = vmatmul.mubr.bf16.gmra.mrb[0].mxu0 %v1386
          %v1591 = vpop.f32.mrb[0].mxu0
          %v1592 = vadd.f32 0.0, %v1591
          %v1593 = vpop.f32.mrb[0].mxu0
          %v1594 = vpop.f32.mrb[0].mxu0
          %v1595 = vadd.f32 0.0, %v1594
          %v1596 = vpop.f32.mrb[0].mxu0
          %1597 = vmatprep.mubr.bf16.mxu0 0
          %1598 = vmatmul.mubr.bf16.gmra.mrb[0].mxu0 %v1387
          %v1599 = vpop.f32.mrb[0].mxu0
          %v1600 = vadd.f32 0.0, %v1599
          %v1601 = vpop.f32.mrb[0].mxu0
          %v1602 = vpop.f32.mrb[0].mxu0
          %v1603 = vadd.f32 0.0, %v1602
          %v1604 = vpop.f32.mrb[0].mxu0
          %1605 = vmatprep.mubr.bf16.mxu0 0
          %1606 = vmatmul.mubr.bf16.gmra.mrb[0].mxu0 %v1388
          %v1607 = vpop.f32.mrb[0].mxu0
          %v1608 = vadd.f32 0.0, %v1607
          %v1609 = vpop.f32.mrb[0].mxu0
          %v1610 = vpop.f32.mrb[0].mxu0
          %v1611 = vadd.f32 0.0, %v1610
          %v1612 = vpop.f32.mrb[0].mxu0
          %1613 = vdwg.mxu0
          %v1614 = vpack.c.bf16 %v1491, %v1488
          %v1615 = vpack.c.bf16 %v1499, %v1496
          %v1616 = vpack.c.bf16 %v1507, %v1504
          %v1617 = vpack.c.bf16 %v1515, %v1512
          %v1618 = vpack.c.bf16 %v1523, %v1520
          %v1619 = vpack.c.bf16 %v1531, %v1528
          %v1620 = vpack.c.bf16 %v1539, %v1536
          %v1621 = vpack.c.bf16 %v1547, %v1544
          %v1622 = vpack.c.bf16 %v1555, %v1552
          %v1623 = vpack.c.bf16 %v1563, %v1560
          %v1624 = vpack.c.bf16 %v1571, %v1568
          %v1625 = vpack.c.bf16 %v1579, %v1576
          %v1626 = vpack.c.bf16 %v1587, %v1584
          %v1627 = vpack.c.bf16 %v1595, %v1592
          %v1628 = vpack.c.bf16 %v1603, %v1600
          %v1629 = vpack.c.bf16 %v1611, %v1608
          %s1630 = sshra.s32 %s1372, 4
          %s1631 = sand.u32 %s1372, 15
          %s1632 = smul.addr %s1630, 8
          %s1633 = scalar_lea.vmem [#allocation4], %s1632
          %1634 = vst [vmem:[%s1633] sm:$0xff] %v1614
          %1635 = vst [vmem:[%s1633 + $0x8] sm:$0xff] %v1615
          %1636 = vst [vmem:[%s1633 + $0x10] sm:$0xff] %v1616
          %1637 = vst [vmem:[%s1633 + $0x18] sm:$0xff] %v1617
          %1638 = vst [vmem:[%s1633 + $0x20] sm:$0xff] %v1618
          %1639 = vst [vmem:[%s1633 + $0x28] sm:$0xff] %v1619
          %1640 = vst [vmem:[%s1633 + $0x30] sm:$0xff] %v1620
          %1641 = vst [vmem:[%s1633 + $0x38] sm:$0xff] %v1621
          %1642 = vst [vmem:[%s1633 + $0x40] sm:$0xff] %v1622
          %1643 = vst [vmem:[%s1633 + $0x48] sm:$0xff] %v1623
          %1644 = vst [vmem:[%s1633 + $0x50] sm:$0xff] %v1624
          %1645 = vst [vmem:[%s1633 + $0x58] sm:$0xff] %v1625
          %1646 = vst [vmem:[%s1633 + $0x60] sm:$0xff] %v1626
          %1647 = vst [vmem:[%s1633 + $0x68] sm:$0xff] %v1627
          %1648 = vst [vmem:[%s1633 + $0x70] sm:$0xff] %v1628
          %1649 = vst [vmem:[%s1633 + $0x78] sm:$0xff] %v1629
        $region60: #{simple_gcn_forward.1} parent=51 // pred_fallthru
          _
      $region52: #{simple_gcn_forward.1} parent=43 // pred_fallthru
        _
      %p1650 = scmp.eq.s32.totalorder %s22, 1
      // Predicated region
      $region61: #{simple_gcn_forward.1} parent=43 // pred_check
        %p1651 = pneg %p1650
      $region62: #{simple_gcn_forward.1} parent=43 // pred_check_branch
        %1653 = sbr.rel (%p1651) target = $region64
      $region63: #{simple_gcn_forward.1} parent=43 // pred_region
        %s1654 = smul.u32 %s24, 256
        %v1655 = vld [vmem:[#allocation2] sm:$0xff]
        %v1656 = vld [vmem:[#allocation2 + $0x8] sm:$0xff]
        %v1657 = vld [vmem:[#allocation2 + $0x10] sm:$0xff]
        %v1658 = vld [vmem:[#allocation2 + $0x18] sm:$0xff]
        %v1659 = vld [vmem:[#allocation2 + $0x20] sm:$0xff]
        %v1660 = vld [vmem:[#allocation2 + $0x28] sm:$0xff]
        %v1661 = vld [vmem:[#allocation2 + $0x30] sm:$0xff]
        %v1662 = vld [vmem:[#allocation2 + $0x38] sm:$0xff]
        %v1663 = vld [vmem:[#allocation2 + $0x40] sm:$0xff]
        %v1664 = vld [vmem:[#allocation2 + $0x48] sm:$0xff]
        %v1665 = vld [vmem:[#allocation2 + $0x50] sm:$0xff]
        %v1666 = vld [vmem:[#allocation2 + $0x58] sm:$0xff]
        %v1667 = vld [vmem:[#allocation2 + $0x60] sm:$0xff]
        %v1668 = vld [vmem:[#allocation2 + $0x68] sm:$0xff]
        %v1669 = vld [vmem:[#allocation2 + $0x70] sm:$0xff]
        %v1670 = vld [vmem:[#allocation2 + $0x78] sm:$0xff]
        %v1671 = vld [vmem:[#allocation2 + $0x80] sm:$0xff]
        %v1672 = vld [vmem:[#allocation2 + $0x88] sm:$0xff]
        %v1673 = vld [vmem:[#allocation2 + $0x90] sm:$0xff]
        %v1674 = vld [vmem:[#allocation2 + $0x98] sm:$0xff]
        %v1675 = vld [vmem:[#allocation2 + $0xa0] sm:$0xff]
        %v1676 = vld [vmem:[#allocation2 + $0xa8] sm:$0xff]
        %v1677 = vld [vmem:[#allocation2 + $0xb0] sm:$0xff]
        %v1678 = vld [vmem:[#allocation2 + $0xb8] sm:$0xff]
        %v1679 = vld [vmem:[#allocation2 + $0xc0] sm:$0xff]
        %v1680 = vld [vmem:[#allocation2 + $0xc8] sm:$0xff]
        %v1681 = vld [vmem:[#allocation2 + $0xd0] sm:$0xff]
        %v1682 = vld [vmem:[#allocation2 + $0xd8] sm:$0xff]
        %v1683 = vld [vmem:[#allocation2 + $0xe0] sm:$0xff]
        %v1684 = vld [vmem:[#allocation2 + $0xe8] sm:$0xff]
        %v1685 = vld [vmem:[#allocation2 + $0xf0] sm:$0xff]
        %v1686 = vld [vmem:[#allocation2 + $0xf8] sm:$0xff]
        %v1687 = vld [vmem:[%s333] sm:$0xff]
        %v1688 = vld [vmem:[%s333 + $0x8] sm:$0xff]
        %v1689 = vld [vmem:[%s333 + $0x10] sm:$0xff]
        %v1690 = vld [vmem:[%s333 + $0x18] sm:$0xff]
        %v1691 = vld [vmem:[%s333 + $0x20] sm:$0xff]
        %v1692 = vld [vmem:[%s333 + $0x28] sm:$0xff]
        %v1693 = vld [vmem:[%s333 + $0x30] sm:$0xff]
        %v1694 = vld [vmem:[%s333 + $0x38] sm:$0xff]
        %v1695 = vld [vmem:[%s333 + $0x40] sm:$0xff]
        %v1696 = vld [vmem:[%s333 + $0x48] sm:$0xff]
        %v1697 = vld [vmem:[%s333 + $0x50] sm:$0xff]
        %v1698 = vld [vmem:[%s333 + $0x58] sm:$0xff]
        %v1699 = vld [vmem:[%s333 + $0x60] sm:$0xff]
        %v1700 = vld [vmem:[%s333 + $0x68] sm:$0xff]
        %v1701 = vld [vmem:[%s333 + $0x70] sm:$0xff]
        %v1702 = vld [vmem:[%s333 + $0x78] sm:$0xff]
        %v1703 = vld [vmem:[%s333 + $0x80] sm:$0xff]
        %v1704 = vld [vmem:[%s333 + $0x88] sm:$0xff]
        %v1705 = vld [vmem:[%s333 + $0x90] sm:$0xff]
        %v1706 = vld [vmem:[%s333 + $0x98] sm:$0xff]
        %v1707 = vld [vmem:[%s333 + $0xa0] sm:$0xff]
        %v1708 = vld [vmem:[%s333 + $0xa8] sm:$0xff]
        %v1709 = vld [vmem:[%s333 + $0xb0] sm:$0xff]
        %v1710 = vld [vmem:[%s333 + $0xb8] sm:$0xff]
        %v1711 = vld [vmem:[%s333 + $0xc0] sm:$0xff]
        %v1712 = vld [vmem:[%s333 + $0xc8] sm:$0xff]
        %v1713 = vld [vmem:[%s333 + $0xd0] sm:$0xff]
        %v1714 = vld [vmem:[%s333 + $0xd8] sm:$0xff]
        %v1715 = vld [vmem:[%s333 + $0xe0] sm:$0xff]
        %v1716 = vld [vmem:[%s333 + $0xe8] sm:$0xff]
        %v1717 = vld [vmem:[%s333 + $0xf0] sm:$0xff]
        %v1718 = vld [vmem:[%s333 + $0xf8] sm:$0xff]
        %s1719 = sshra.s32 %s1654, 4
        %s1720 = sand.u32 %s1654, 15
        %s1721 = smul.addr %s1719, 8
        %s1722 = scalar_lea.vmem [#allocation4], %s1721
        %v1723 = vld [vmem:[%s1722] sm:$0xff]
        %v1724 = vld [vmem:[%s1722 + $0x8] sm:$0xff]
        %v1725 = vld [vmem:[%s1722 + $0x10] sm:$0xff]
        %v1726 = vld [vmem:[%s1722 + $0x18] sm:$0xff]
        %v1727 = vld [vmem:[%s1722 + $0x20] sm:$0xff]
        %v1728 = vld [vmem:[%s1722 + $0x28] sm:$0xff]
        %v1729 = vld [vmem:[%s1722 + $0x30] sm:$0xff]
        %v1730 = vld [vmem:[%s1722 + $0x38] sm:$0xff]
        %v1731 = vld [vmem:[%s1722 + $0x40] sm:$0xff]
        %v1732 = vld [vmem:[%s1722 + $0x48] sm:$0xff]
        %v1733 = vld [vmem:[%s1722 + $0x50] sm:$0xff]
        %v1734 = vld [vmem:[%s1722 + $0x58] sm:$0xff]
        %v1735 = vld [vmem:[%s1722 + $0x60] sm:$0xff]
        %v1736 = vld [vmem:[%s1722 + $0x68] sm:$0xff]
        %v1737 = vld [vmem:[%s1722 + $0x70] sm:$0xff]
        %v1738 = vld [vmem:[%s1722 + $0x78] sm:$0xff]
        %v1771 = vunpack.c.l.b16 %v1687
        %v1772 = vunpack.c.h.b16 %v1687
        %v1773 = vunpack.c.l.b16 %v1688
        %v1774 = vunpack.c.h.b16 %v1688
        %v1775 = vunpack.c.l.b16 %v1689
        %v1776 = vunpack.c.h.b16 %v1689
        %v1777 = vunpack.c.l.b16 %v1690
        %v1778 = vunpack.c.h.b16 %v1690
        %v1779 = vunpack.c.l.b16 %v1691
        %v1780 = vunpack.c.h.b16 %v1691
        %v1781 = vunpack.c.l.b16 %v1692
        %v1782 = vunpack.c.h.b16 %v1692
        %v1783 = vunpack.c.l.b16 %v1693
        %v1784 = vunpack.c.h.b16 %v1693
        %v1785 = vunpack.c.l.b16 %v1694
        %v1786 = vunpack.c.h.b16 %v1694
        %v1787 = vunpack.c.l.b16 %v1695
        %v1788 = vunpack.c.h.b16 %v1695
        %v1789 = vunpack.c.l.b16 %v1696
        %v1790 = vunpack.c.h.b16 %v1696
        %v1791 = vunpack.c.l.b16 %v1697
        %v1792 = vunpack.c.h.b16 %v1697
        %v1793 = vunpack.c.l.b16 %v1698
        %v1794 = vunpack.c.h.b16 %v1698
        %v1795 = vunpack.c.l.b16 %v1699
        %v1796 = vunpack.c.h.b16 %v1699
        %v1797 = vunpack.c.l.b16 %v1700
        %v1798 = vunpack.c.h.b16 %v1700
        %v1799 = vunpack.c.l.b16 %v1701
        %v1800 = vunpack.c.h.b16 %v1701
        %v1801 = vunpack.c.l.b16 %v1702
        %v1802 = vunpack.c.h.b16 %v1702
        %v1803 = vunpack.c.l.b16 %v1703
        %v1804 = vunpack.c.h.b16 %v1703
        %v1805 = vunpack.c.l.b16 %v1704
        %v1806 = vunpack.c.h.b16 %v1704
        %v1807 = vunpack.c.l.b16 %v1705
        %v1808 = vunpack.c.h.b16 %v1705
        %v1809 = vunpack.c.l.b16 %v1706
        %v1810 = vunpack.c.h.b16 %v1706
        %v1811 = vunpack.c.l.b16 %v1707
        %v1812 = vunpack.c.h.b16 %v1707
        %v1813 = vunpack.c.l.b16 %v1708
        %v1814 = vunpack.c.h.b16 %v1708
        %v1815 = vunpack.c.l.b16 %v1709
        %v1816 = vunpack.c.h.b16 %v1709
        %v1817 = vunpack.c.l.b16 %v1710
        %v1818 = vunpack.c.h.b16 %v1710
        %v1819 = vunpack.c.l.b16 %v1711
        %v1820 = vunpack.c.h.b16 %v1711
        %v1821 = vunpack.c.l.b16 %v1712
        %v1822 = vunpack.c.h.b16 %v1712
        %v1823 = vunpack.c.l.b16 %v1713
        %v1824 = vunpack.c.h.b16 %v1713
        %v1825 = vunpack.c.l.b16 %v1714
        %v1826 = vunpack.c.h.b16 %v1714
        %v1827 = vunpack.c.l.b16 %v1715
        %v1828 = vunpack.c.h.b16 %v1715
        %v1829 = vunpack.c.l.b16 %v1716
        %v1830 = vunpack.c.h.b16 %v1716
        %v1831 = vunpack.c.l.b16 %v1717
        %v1832 = vunpack.c.h.b16 %v1717
        %v1833 = vunpack.c.l.b16 %v1718
        %v1834 = vunpack.c.h.b16 %v1718
        %v1835 = vpack.c.b16 %v1773, %v1771
        %v1836 = vpack.c.b16 %v1774, %v1772
        %v1837 = vpack.c.b16 %v1777, %v1775
        %v1838 = vpack.c.b16 %v1778, %v1776
        %v1839 = vpack.c.b16 %v1781, %v1779
        %v1840 = vpack.c.b16 %v1782, %v1780
        %v1841 = vpack.c.b16 %v1785, %v1783
        %v1842 = vpack.c.b16 %v1786, %v1784
        %v1843 = vpack.c.b16 %v1789, %v1787
        %v1844 = vpack.c.b16 %v1790, %v1788
        %v1845 = vpack.c.b16 %v1793, %v1791
        %v1846 = vpack.c.b16 %v1794, %v1792
        %v1847 = vpack.c.b16 %v1797, %v1795
        %v1848 = vpack.c.b16 %v1798, %v1796
        %v1849 = vpack.c.b16 %v1801, %v1799
        %v1850 = vpack.c.b16 %v1802, %v1800
        %v1851 = vpack.c.b16 %v1805, %v1803
        %v1852 = vpack.c.b16 %v1806, %v1804
        %v1853 = vpack.c.b16 %v1809, %v1807
        %v1854 = vpack.c.b16 %v1810, %v1808
        %v1855 = vpack.c.b16 %v1813, %v1811
        %v1856 = vpack.c.b16 %v1814, %v1812
        %v1857 = vpack.c.b16 %v1817, %v1815
        %v1858 = vpack.c.b16 %v1818, %v1816
        %v1859 = vpack.c.b16 %v1821, %v1819
        %v1860 = vpack.c.b16 %v1822, %v1820
        %v1861 = vpack.c.b16 %v1825, %v1823
        %v1862 = vpack.c.b16 %v1826, %v1824
        %v1863 = vpack.c.b16 %v1829, %v1827
        %v1864 = vpack.c.b16 %v1830, %v1828
        %v1865 = vpack.c.b16 %v1833, %v1831
        %v1866 = vpack.c.b16 %v1834, %v1832
        %1899 = vmatprep.subr.bf16.mxu0 0
        %1900 = vmatpush1.bf16.msra.mxu0 %v1723
        %1901 = vmatprep.subr.bf16.mxu0 0
        %1902 = vmatpush1.bf16.msra.mxu0 %v1724
        %1903 = vmatprep.subr.bf16.mxu0 0
        %1904 = vmatpush1.bf16.msra.mxu0 %v1725
        %1905 = vmatprep.subr.bf16.mxu0 0
        %1906 = vmatpush1.bf16.msra.mxu0 %v1726
        %1907 = vmatprep.subr.bf16.mxu0 0
        %1908 = vmatpush1.bf16.msra.mxu0 %v1727
        %1909 = vmatprep.subr.bf16.mxu0 0
        %1910 = vmatpush1.bf16.msra.mxu0 %v1728
        %1911 = vmatprep.subr.bf16.mxu0 0
        %1912 = vmatpush1.bf16.msra.mxu0 %v1729
        %1913 = vmatprep.subr.bf16.mxu0 0
        %1914 = vmatpush1.bf16.msra.mxu0 %v1730
        %1915 = vmatprep.subr.bf16.mxu0 0
        %1916 = vmatpush1.bf16.msra.mxu0 %v1731
        %1917 = vmatprep.subr.bf16.mxu0 0
        %1918 = vmatpush1.bf16.msra.mxu0 %v1732
        %1919 = vmatprep.subr.bf16.mxu0 0
        %1920 = vmatpush1.bf16.msra.mxu0 %v1733
        %1921 = vmatprep.subr.bf16.mxu0 0
        %1922 = vmatpush1.bf16.msra.mxu0 %v1734
        %1923 = vmatprep.subr.bf16.mxu0 0
        %1924 = vmatpush1.bf16.msra.mxu0 %v1735
        %1925 = vmatprep.subr.bf16.mxu0 0
        %1926 = vmatpush1.bf16.msra.mxu0 %v1736
        %1927 = vmatprep.subr.bf16.mxu0 0
        %1928 = vmatpush1.bf16.msra.mxu0 %v1737
        %1929 = vmatprep.subr.bf16.mxu0 0
        %1930 = vmatpush1.bf16.msra.mxu0 %v1738
        %1931 = vmatprep.mubr.bf16.mxu0 %v1836
        %1932 = vmatmul.mubr.bf16.gmra.mrb[0].mxu0 %v1835
        %v1933 = vpop.f32.mrb[0].mxu0
        %v1934 = vadd.f32 0.0, %v1933
        %v1935 = vpop.f32.mrb[0].mxu0
        %v1936 = vpop.f32.mrb[0].mxu0
        %v1937 = vadd.f32 0.0, %v1936
        %v1938 = vpop.f32.mrb[0].mxu0
        %1939 = vmatprep.mubr.bf16.mxu0 %v1838
        %1940 = vmatmul.mubr.bf16.gmra.mrb[0].mxu0 %v1837
        %v1941 = vpop.f32.mrb[0].mxu0
        %v1942 = vadd.f32 0.0, %v1941
        %v1943 = vpop.f32.mrb[0].mxu0
        %v1944 = vpop.f32.mrb[0].mxu0
        %v1945 = vadd.f32 0.0, %v1944
        %v1946 = vpop.f32.mrb[0].mxu0
        %1947 = vmatprep.mubr.bf16.mxu0 %v1840
        %1948 = vmatmul.mubr.bf16.gmra.mrb[0].mxu0 %v1839
        %v1949 = vpop.f32.mrb[0].mxu0
        %v1950 = vadd.f32 0.0, %v1949
        %v1951 = vpop.f32.mrb[0].mxu0
        %v1952 = vpop.f32.mrb[0].mxu0
        %v1953 = vadd.f32 0.0, %v1952
        %v1954 = vpop.f32.mrb[0].mxu0
        %1955 = vmatprep.mubr.bf16.mxu0 %v1842
        %1956 = vmatmul.mubr.bf16.gmra.mrb[0].mxu0 %v1841
        %v1957 = vpop.f32.mrb[0].mxu0
        %v1958 = vadd.f32 0.0, %v1957
        %v1959 = vpop.f32.mrb[0].mxu0
        %v1960 = vpop.f32.mrb[0].mxu0
        %v1961 = vadd.f32 0.0, %v1960
        %v1962 = vpop.f32.mrb[0].mxu0
        %1963 = vmatprep.mubr.bf16.mxu0 %v1844
        %1964 = vmatmul.mubr.bf16.gmra.mrb[0].mxu0 %v1843
        %v1965 = vpop.f32.mrb[0].mxu0
        %v1966 = vadd.f32 0.0, %v1965
        %v1967 = vpop.f32.mrb[0].mxu0
        %v1968 = vpop.f32.mrb[0].mxu0
        %v1969 = vadd.f32 0.0, %v1968
        %v1970 = vpop.f32.mrb[0].mxu0
        %1971 = vmatprep.mubr.bf16.mxu0 %v1846
        %1972 = vmatmul.mubr.bf16.gmra.mrb[0].mxu0 %v1845
        %v1973 = vpop.f32.mrb[0].mxu0
        %v1974 = vadd.f32 0.0, %v1973
        %v1975 = vpop.f32.mrb[0].mxu0
        %v1976 = vpop.f32.mrb[0].mxu0
        %v1977 = vadd.f32 0.0, %v1976
        %v1978 = vpop.f32.mrb[0].mxu0
        %1979 = vmatprep.mubr.bf16.mxu0 %v1848
        %1980 = vmatmul.mubr.bf16.gmra.mrb[0].mxu0 %v1847
        %v1981 = vpop.f32.mrb[0].mxu0
        %v1982 = vadd.f32 0.0, %v1981
        %v1983 = vpop.f32.mrb[0].mxu0
        %v1984 = vpop.f32.mrb[0].mxu0
        %v1985 = vadd.f32 0.0, %v1984
        %v1986 = vpop.f32.mrb[0].mxu0
        %1987 = vmatprep.mubr.bf16.mxu0 %v1850
        %1988 = vmatmul.mubr.bf16.gmra.mrb[0].mxu0 %v1849
        %v1989 = vpop.f32.mrb[0].mxu0
        %v1990 = vadd.f32 0.0, %v1989
        %v1991 = vpop.f32.mrb[0].mxu0
        %v1992 = vpop.f32.mrb[0].mxu0
        %v1993 = vadd.f32 0.0, %v1992
        %v1994 = vpop.f32.mrb[0].mxu0
        %1995 = vmatprep.mubr.bf16.mxu0 %v1852
        %1996 = vmatmul.mubr.bf16.gmra.mrb[0].mxu0 %v1851
        %v1997 = vpop.f32.mrb[0].mxu0
        %v1998 = vadd.f32 0.0, %v1997
        %v1999 = vpop.f32.mrb[0].mxu0
        %v2000 = vpop.f32.mrb[0].mxu0
        %v2001 = vadd.f32 0.0, %v2000
        %v2002 = vpop.f32.mrb[0].mxu0
        %2003 = vmatprep.mubr.bf16.mxu0 %v1854
        %2004 = vmatmul.mubr.bf16.gmra.mrb[0].mxu0 %v1853
        %v2005 = vpop.f32.mrb[0].mxu0
        %v2006 = vadd.f32 0.0, %v2005
        %v2007 = vpop.f32.mrb[0].mxu0
        %v2008 = vpop.f32.mrb[0].mxu0
        %v2009 = vadd.f32 0.0, %v2008
        %v2010 = vpop.f32.mrb[0].mxu0
        %2011 = vmatprep.mubr.bf16.mxu0 %v1856
        %2012 = vmatmul.mubr.bf16.gmra.mrb[0].mxu0 %v1855
        %v2013 = vpop.f32.mrb[0].mxu0
        %v2014 = vadd.f32 0.0, %v2013
        %v2015 = vpop.f32.mrb[0].mxu0
        %v2016 = vpop.f32.mrb[0].mxu0
        %v2017 = vadd.f32 0.0, %v2016
        %v2018 = vpop.f32.mrb[0].mxu0
        %2019 = vmatprep.mubr.bf16.mxu0 %v1858
        %2020 = vmatmul.mubr.bf16.gmra.mrb[0].mxu0 %v1857
        %v2021 = vpop.f32.mrb[0].mxu0
        %v2022 = vadd.f32 0.0, %v2021
        %v2023 = vpop.f32.mrb[0].mxu0
        %v2024 = vpop.f32.mrb[0].mxu0
        %v2025 = vadd.f32 0.0, %v2024
        %v2026 = vpop.f32.mrb[0].mxu0
        %2027 = vmatprep.mubr.bf16.mxu0 %v1860
        %2028 = vmatmul.mubr.bf16.gmra.mrb[0].mxu0 %v1859
        %v2029 = vpop.f32.mrb[0].mxu0
        %v2030 = vadd.f32 0.0, %v2029
        %v2031 = vpop.f32.mrb[0].mxu0
        %v2032 = vpop.f32.mrb[0].mxu0
        %v2033 = vadd.f32 0.0, %v2032
        %v2034 = vpop.f32.mrb[0].mxu0
        %2035 = vmatprep.mubr.bf16.mxu0 %v1862
        %2036 = vmatmul.mubr.bf16.gmra.mrb[0].mxu0 %v1861
        %v2037 = vpop.f32.mrb[0].mxu0
        %v2038 = vadd.f32 0.0, %v2037
        %v2039 = vpop.f32.mrb[0].mxu0
        %v2040 = vpop.f32.mrb[0].mxu0
        %v2041 = vadd.f32 0.0, %v2040
        %v2042 = vpop.f32.mrb[0].mxu0
        %2043 = vmatprep.mubr.bf16.mxu0 %v1864
        %2044 = vmatmul.mubr.bf16.gmra.mrb[0].mxu0 %v1863
        %v2045 = vpop.f32.mrb[0].mxu0
        %v2046 = vadd.f32 0.0, %v2045
        %v2047 = vpop.f32.mrb[0].mxu0
        %v2048 = vpop.f32.mrb[0].mxu0
        %v2049 = vadd.f32 0.0, %v2048
        %v2050 = vpop.f32.mrb[0].mxu0
        %2051 = vmatprep.mubr.bf16.mxu0 %v1866
        %2052 = vmatmul.mubr.bf16.gmra.mrb[0].mxu0 %v1865
        %v2053 = vpop.f32.mrb[0].mxu0
        %v2054 = vadd.f32 0.0, %v2053
        %v2055 = vpop.f32.mrb[0].mxu0
        %v2056 = vpop.f32.mrb[0].mxu0
        %v2057 = vadd.f32 0.0, %v2056
        %v2058 = vpop.f32.mrb[0].mxu0
        %2059 = vdwg.mxu0
        %v2060 = vadd.f32 %v1655, %v1934
        %v2061 = vadd.f32 %v1656, %v1937
        %v2062 = vadd.f32 %v1657, %v1942
        %v2063 = vadd.f32 %v1658, %v1945
        %v2064 = vadd.f32 %v1659, %v1950
        %v2065 = vadd.f32 %v1660, %v1953
        %v2066 = vadd.f32 %v1661, %v1958
        %v2067 = vadd.f32 %v1662, %v1961
        %v2068 = vadd.f32 %v1663, %v1966
        %v2069 = vadd.f32 %v1664, %v1969
        %v2070 = vadd.f32 %v1665, %v1974
        %v2071 = vadd.f32 %v1666, %v1977
        %v2072 = vadd.f32 %v1667, %v1982
        %v2073 = vadd.f32 %v1668, %v1985
        %v2074 = vadd.f32 %v1669, %v1990
        %v2075 = vadd.f32 %v1670, %v1993
        %v2076 = vadd.f32 %v1671, %v1998
        %v2077 = vadd.f32 %v1672, %v2001
        %v2078 = vadd.f32 %v1673, %v2006
        %v2079 = vadd.f32 %v1674, %v2009
        %v2080 = vadd.f32 %v1675, %v2014
        %v2081 = vadd.f32 %v1676, %v2017
        %v2082 = vadd.f32 %v1677, %v2022
        %v2083 = vadd.f32 %v1678, %v2025
        %v2084 = vadd.f32 %v1679, %v2030
        %v2085 = vadd.f32 %v1680, %v2033
        %v2086 = vadd.f32 %v1681, %v2038
        %v2087 = vadd.f32 %v1682, %v2041
        %v2088 = vadd.f32 %v1683, %v2046
        %v2089 = vadd.f32 %v1684, %v2049
        %v2090 = vadd.f32 %v1685, %v2054
        %v2091 = vadd.f32 %v1686, %v2057
        %2092 = vst [vmem:[#allocation2] sm:$0xff] %v2060
        %2093 = vst [vmem:[#allocation2 + $0x8] sm:$0xff] %v2061
        %2094 = vst [vmem:[#allocation2 + $0x10] sm:$0xff] %v2062
        %2095 = vst [vmem:[#allocation2 + $0x18] sm:$0xff] %v2063
        %2096 = vst [vmem:[#allocation2 + $0x20] sm:$0xff] %v2064
        %2097 = vst [vmem:[#allocation2 + $0x28] sm:$0xff] %v2065
        %2098 = vst [vmem:[#allocation2 + $0x30] sm:$0xff] %v2066
        %2099 = vst [vmem:[#allocation2 + $0x38] sm:$0xff] %v2067
        %2100 = vst [vmem:[#allocation2 + $0x40] sm:$0xff] %v2068
        %2101 = vst [vmem:[#allocation2 + $0x48] sm:$0xff] %v2069
        %2102 = vst [vmem:[#allocation2 + $0x50] sm:$0xff] %v2070
        %2103 = vst [vmem:[#allocation2 + $0x58] sm:$0xff] %v2071
        %2104 = vst [vmem:[#allocation2 + $0x60] sm:$0xff] %v2072
        %2105 = vst [vmem:[#allocation2 + $0x68] sm:$0xff] %v2073
        %2106 = vst [vmem:[#allocation2 + $0x70] sm:$0xff] %v2074
        %2107 = vst [vmem:[#allocation2 + $0x78] sm:$0xff] %v2075
        %2108 = vst [vmem:[#allocation2 + $0x80] sm:$0xff] %v2076
        %2109 = vst [vmem:[#allocation2 + $0x88] sm:$0xff] %v2077
        %2110 = vst [vmem:[#allocation2 + $0x90] sm:$0xff] %v2078
        %2111 = vst [vmem:[#allocation2 + $0x98] sm:$0xff] %v2079
        %2112 = vst [vmem:[#allocation2 + $0xa0] sm:$0xff] %v2080
        %2113 = vst [vmem:[#allocation2 + $0xa8] sm:$0xff] %v2081
        %2114 = vst [vmem:[#allocation2 + $0xb0] sm:$0xff] %v2082
        %2115 = vst [vmem:[#allocation2 + $0xb8] sm:$0xff] %v2083
        %2116 = vst [vmem:[#allocation2 + $0xc0] sm:$0xff] %v2084
        %2117 = vst [vmem:[#allocation2 + $0xc8] sm:$0xff] %v2085
        %2118 = vst [vmem:[#allocation2 + $0xd0] sm:$0xff] %v2086
        %2119 = vst [vmem:[#allocation2 + $0xd8] sm:$0xff] %v2087
        %2120 = vst [vmem:[#allocation2 + $0xe0] sm:$0xff] %v2088
        %2121 = vst [vmem:[#allocation2 + $0xe8] sm:$0xff] %v2089
        %2122 = vst [vmem:[#allocation2 + $0xf0] sm:$0xff] %v2090
        %2123 = vst [vmem:[#allocation2 + $0xf8] sm:$0xff] %v2091
        // Predicated region
        $region65: #{simple_gcn_forward.1} parent=63 // pred_check
          %p2124 = pneg %p363
        $region66: #{simple_gcn_forward.1} parent=63 // pred_check_branch
          %2126 = sbr.rel (%p2124) target = $region68
        $region67: #{simple_gcn_forward.1} parent=63 // pred_region
          %v2127 = vld [vmem:[#allocation2] sm:$0xff]
          %v2128 = vld [vmem:[#allocation2 + $0x8] sm:$0xff]
          %v2129 = vld [vmem:[#allocation2 + $0x10] sm:$0xff]
          %v2130 = vld [vmem:[#allocation2 + $0x18] sm:$0xff]
          %v2131 = vld [vmem:[#allocation2 + $0x20] sm:$0xff]
          %v2132 = vld [vmem:[#allocation2 + $0x28] sm:$0xff]
          %v2133 = vld [vmem:[#allocation2 + $0x30] sm:$0xff]
          %v2134 = vld [vmem:[#allocation2 + $0x38] sm:$0xff]
          %v2135 = vld [vmem:[#allocation2 + $0x40] sm:$0xff]
          %v2136 = vld [vmem:[#allocation2 + $0x48] sm:$0xff]
          %v2137 = vld [vmem:[#allocation2 + $0x50] sm:$0xff]
          %v2138 = vld [vmem:[#allocation2 + $0x58] sm:$0xff]
          %v2139 = vld [vmem:[#allocation2 + $0x60] sm:$0xff]
          %v2140 = vld [vmem:[#allocation2 + $0x68] sm:$0xff]
          %v2141 = vld [vmem:[#allocation2 + $0x70] sm:$0xff]
          %v2142 = vld [vmem:[#allocation2 + $0x78] sm:$0xff]
          %v2143 = vld [vmem:[#allocation2 + $0x80] sm:$0xff]
          %v2144 = vld [vmem:[#allocation2 + $0x88] sm:$0xff]
          %v2145 = vld [vmem:[#allocation2 + $0x90] sm:$0xff]
          %v2146 = vld [vmem:[#allocation2 + $0x98] sm:$0xff]
          %v2147 = vld [vmem:[#allocation2 + $0xa0] sm:$0xff]
          %v2148 = vld [vmem:[#allocation2 + $0xa8] sm:$0xff]
          %v2149 = vld [vmem:[#allocation2 + $0xb0] sm:$0xff]
          %v2150 = vld [vmem:[#allocation2 + $0xb8] sm:$0xff]
          %v2151 = vld [vmem:[#allocation2 + $0xc0] sm:$0xff]
          %v2152 = vld [vmem:[#allocation2 + $0xc8] sm:$0xff]
          %v2153 = vld [vmem:[#allocation2 + $0xd0] sm:$0xff]
          %v2154 = vld [vmem:[#allocation2 + $0xd8] sm:$0xff]
          %v2155 = vld [vmem:[#allocation2 + $0xe0] sm:$0xff]
          %v2156 = vld [vmem:[#allocation2 + $0xe8] sm:$0xff]
          %v2157 = vld [vmem:[#allocation2 + $0xf0] sm:$0xff]
          %v2158 = vld [vmem:[#allocation2 + $0xf8] sm:$0xff]
          %v2159 = vld [vmem:[%s5] sm:$0x1]
          %v2161 = vlaneseq
          %v2162 = vshrl.u32 %v2161, 7
          %v2163 = vsub.s32 0, %v2162
          %v2164 = vrot.slane %v2159, %v2163
          %v2166 = vadd.f32 %v2127, %v2164
          %v2167 = vadd.f32 %v2128, %v2164
          %v2168 = vadd.f32 %v2129, %v2164
          %v2169 = vadd.f32 %v2130, %v2164
          %v2170 = vadd.f32 %v2131, %v2164
          %v2171 = vadd.f32 %v2132, %v2164
          %v2172 = vadd.f32 %v2133, %v2164
          %v2173 = vadd.f32 %v2134, %v2164
          %v2174 = vadd.f32 %v2135, %v2164
          %v2175 = vadd.f32 %v2136, %v2164
          %v2176 = vadd.f32 %v2137, %v2164
          %v2177 = vadd.f32 %v2138, %v2164
          %v2178 = vadd.f32 %v2139, %v2164
          %v2179 = vadd.f32 %v2140, %v2164
          %v2180 = vadd.f32 %v2141, %v2164
          %v2181 = vadd.f32 %v2142, %v2164
          %v2182 = vadd.f32 %v2143, %v2164
          %v2183 = vadd.f32 %v2144, %v2164
          %v2184 = vadd.f32 %v2145, %v2164
          %v2185 = vadd.f32 %v2146, %v2164
          %v2186 = vadd.f32 %v2147, %v2164
          %v2187 = vadd.f32 %v2148, %v2164
          %v2188 = vadd.f32 %v2149, %v2164
          %v2189 = vadd.f32 %v2150, %v2164
          %v2190 = vadd.f32 %v2151, %v2164
          %v2191 = vadd.f32 %v2152, %v2164
          %v2192 = vadd.f32 %v2153, %v2164
          %v2193 = vadd.f32 %v2154, %v2164
          %v2194 = vadd.f32 %v2155, %v2164
          %v2195 = vadd.f32 %v2156, %v2164
          %v2196 = vadd.f32 %v2157, %v2164
          %v2197 = vadd.f32 %v2158, %v2164
          %2198 = vst [vmem:[%s359] sm:$0xff] %v2166
          %2199 = vst [vmem:[%s359 + $0x8] sm:$0xff] %v2167
          %2200 = vst [vmem:[%s359 + $0x10] sm:$0xff] %v2168
          %2201 = vst [vmem:[%s359 + $0x18] sm:$0xff] %v2169
          %2202 = vst [vmem:[%s359 + $0x20] sm:$0xff] %v2170
          %2203 = vst [vmem:[%s359 + $0x28] sm:$0xff] %v2171
          %2204 = vst [vmem:[%s359 + $0x30] sm:$0xff] %v2172
          %2205 = vst [vmem:[%s359 + $0x38] sm:$0xff] %v2173
          %2206 = vst [vmem:[%s359 + $0x40] sm:$0xff] %v2174
          %2207 = vst [vmem:[%s359 + $0x48] sm:$0xff] %v2175
          %2208 = vst [vmem:[%s359 + $0x50] sm:$0xff] %v2176
          %2209 = vst [vmem:[%s359 + $0x58] sm:$0xff] %v2177
          %2210 = vst [vmem:[%s359 + $0x60] sm:$0xff] %v2178
          %2211 = vst [vmem:[%s359 + $0x68] sm:$0xff] %v2179
          %2212 = vst [vmem:[%s359 + $0x70] sm:$0xff] %v2180
          %2213 = vst [vmem:[%s359 + $0x78] sm:$0xff] %v2181
          %2214 = vst [vmem:[%s359 + $0x80] sm:$0xff] %v2182
          %2215 = vst [vmem:[%s359 + $0x88] sm:$0xff] %v2183
          %2216 = vst [vmem:[%s359 + $0x90] sm:$0xff] %v2184
          %2217 = vst [vmem:[%s359 + $0x98] sm:$0xff] %v2185
          %2218 = vst [vmem:[%s359 + $0xa0] sm:$0xff] %v2186
          %2219 = vst [vmem:[%s359 + $0xa8] sm:$0xff] %v2187
          %2220 = vst [vmem:[%s359 + $0xb0] sm:$0xff] %v2188
          %2221 = vst [vmem:[%s359 + $0xb8] sm:$0xff] %v2189
          %2222 = vst [vmem:[%s359 + $0xc0] sm:$0xff] %v2190
          %2223 = vst [vmem:[%s359 + $0xc8] sm:$0xff] %v2191
          %2224 = vst [vmem:[%s359 + $0xd0] sm:$0xff] %v2192
          %2225 = vst [vmem:[%s359 + $0xd8] sm:$0xff] %v2193
          %2226 = vst [vmem:[%s359 + $0xe0] sm:$0xff] %v2194
          %2227 = vst [vmem:[%s359 + $0xe8] sm:$0xff] %v2195
          %2228 = vst [vmem:[%s359 + $0xf0] sm:$0xff] %v2196
          %2229 = vst [vmem:[%s359 + $0xf8] sm:$0xff] %v2197
        $region68: #{simple_gcn_forward.1} parent=63 // pred_fallthru
          _
      $region64: #{simple_gcn_forward.1} parent=43 // pred_fallthru
        _
      %s2230 = smul.u32 %s23, %s22
      %s2231 = smul.u32 32, %s2230
      %p2232 = scmp.lt.s32.totalorder %s2231, 31
      %s2233 = scalar_select %p2232, %s2231, 31
      %s2234 = smul.addr %s2233, 8
      %s2235 = scalar_lea.vmem %s6, %s2234
      // Predicated region
      $region69: #{simple_gcn_forward.1} parent=43 // pred_check
        %p2236 = pneg %p206
      $region70: #{simple_gcn_forward.1} parent=43 // pred_check_branch
        %2238 = sbr.rel (%p2236) target = $region72
      $region71: #{simple_gcn_forward.1} parent=43 // pred_region
        %s2239 = smul.u32 %s23, %s22
        %s2240 = smul.u32 32, %s2239
      $region72: #{simple_gcn_forward.1} parent=43 // pred_fallthru
        _
    $region44: #{simple_gcn_forward.1} parent=5 // pred_fallthru
      _
    %p2241 = scmp.le.s32.totalorder 2, %s12
    // Predicated region
    $region73: #{simple_gcn_forward.1} parent=5 // pred_check
      %p2242 = pneg %p2241
    $region74: #{simple_gcn_forward.1} parent=5 // pred_check_branch
      %2244 = sbr.rel (%p2242) target = $region76
    $region75: #{simple_gcn_forward.1} parent=5 // pred_region
      %s2245 = ssub.s32 %s12, 2
      // Predicated region
      $region77: #{simple_gcn_forward.1} parent=75 // pred_check
        %p2246 = pneg %p212
      $region78: #{simple_gcn_forward.1} parent=75 // pred_check_branch
        %2248 = sbr.rel (%p2246) target = $region80
      $region79: #{simple_gcn_forward.1} parent=75 // pred_region
        %s2249 = smul.u32 %s26, %s25
        %s2250 = smul.u32 32, %s2249
        %p2251 = scmp.lt.s32.totalorder %s2250, 31
        %s2252 = scalar_select %p2251, %s2250, 31
        %s2253 = smul.addr %s2252, 8
        %s2254 = scalar_lea.vmem %s6, %s2253
      $region80: #{simple_gcn_forward.1} parent=75 // pred_fallthru
        _
    $region76: #{simple_gcn_forward.1} parent=5 // pred_fallthru
      _
  $region6: #{simple_gcn_forward.1} parent=0 // loop_footer
    %s16 = sadd.s32 1, %s12
  $region7: #{simple_gcn_forward.1} parent=0 // loop_footer_branch
    %11 = sbr.rel target = $region3
  $region8: #{simple_gcn_forward.1} parent=0 // loop_exit
    _

</llo_original>
